<compile_context>
chip_gen: v7x
topology: tpu7x:2x2x1
jax: 0.10.0
libtpu: 0.0.40
codegen_flags: <defaults>
</compile_context>

<pallas_src>
import functools

import jax
import jax.numpy as jnp
from jax import lax
from jax.experimental import pallas as pl
from jax.experimental.pallas import tpu as pltpu


# ---- softmax helpers in the [K, TB] layout (classes on sublanes) ------------
def _log_softmax_sub(zt):
    m = jnp.max(zt, axis=0, keepdims=True)
    s = zt - m
    return s - jnp.log(jnp.sum(jnp.exp(s), axis=0, keepdims=True))


def _softmax_sub(zt):
    m = jnp.max(zt, axis=0, keepdims=True)
    e = jnp.exp(zt - m)
    return e * pl.reciprocal(jnp.sum(e, axis=0, keepdims=True), approx=True)


def _l2_normalize(v):
    # Matches PyTorch _l2_normalize: per-sample L2 norm over non-batch dims,
    # denominator = norm + 1e-8 (approx reciprocal -> EUP slot).
    nrm = jnp.sqrt(jnp.sum(v * v, axis=1, keepdims=True))
    return v * pl.reciprocal(nrm + 1e-8, approx=True)


def _vat_kernel(x_ref, d_ref, w_ref, wt_ref, b_ref, o_ref, *, xi, eps, ip, inv_b):
    x = x_ref[...].astype(jnp.float32)   # [TB, D]
    d = d_ref[...].astype(jnp.float32)   # [TB, D] raw uniform(-0.5, 0.5) noise
    w = w_ref[...]                        # [D, K]  f32
    wt = wt_ref[...]                      # [K, D]  f32 (W^T, transposed in wrapper)
    b = b_ref[...]                        # [1, K]  f32

    # "with torch.no_grad(): pred = softmax(model(x))" -- one big matmul, reused.
    logits_x = jnp.dot(x, w, preferred_element_type=jnp.float32) + b    # [TB, K]
    # K is tiny (8): put classes on sublanes, batch on lanes so the
    # exp/max/sum chain is lane-dense (uses all 128 lanes, not 8/128).
    logits_x_t = logits_x.T                                             # [K, TB]
    logpred_t = _log_softmax_sub(logits_x_t)
    pred_t = jnp.exp(logpred_t)                                         # strictly > 0

    d = _l2_normalize(d)

    # TODO(synk): BN running-stats toggling (_disable_tracking_bn_stats) has no
    # equivalent here -- the synthetic linear model has no batch-norm.
    def power_iter(dd):
        # model(x + xi*dd) == logits_x + xi * (dd @ W)
        dw_t = jnp.dot(dd, w, preferred_element_type=jnp.float32).T     # [K, TB]
        p_hat_t = _softmax_sub(logits_x_t + xi * dw_t)                  # [K, TB]
        # Exact analytic grad of batchmean KL wrt dd: (xi/B) * (p_hat - pred) @ W^T.
        diff = ((xi * inv_b) * (p_hat_t - pred_t)).T                    # [TB, K]
        grad_d = jnp.dot(diff, wt, preferred_element_type=jnp.float32)  # [TB, D]
        return _l2_normalize(grad_d)

    if ip == 1:
        d = power_iter(d)
    else:
        d = lax.fori_loop(0, ip, lambda _, dd: power_iter(dd), d)

    # LDS = KL(pred || softmax(model(x + eps*d))); per-sample class-sum here,
    # the 'batchmean' reduction (global sum / B) is finished in the wrapper.
    dw_t = jnp.dot(d, w, preferred_element_type=jnp.float32).T          # [K, TB]
    logp_hat_t = _log_softmax_sub(logits_x_t + eps * dw_t)
    kl = jnp.sum(pred_t * (logpred_t - logp_hat_t), axis=0, keepdims=True)  # [1, TB]
    o_ref[...] = kl.reshape(1, 1, -1)                                    # lane-dense row


def _pick_batch_tile(B):
    # Largest multiple-of-8 divisor of B that is <= 512 and gives >= 2 grid
    # steps (pipelining + megacore sharding on v7x).  Tiny / awkward batches
    # fall back to a single full-batch tile (block == full array dim is legal).
    candidates = [t for t in range(8, min(512, B) + 1, 8) if B % t == 0 and t < B]
    return max(candidates) if candidates else B


def vat_loss(x, d0, w, b, *, xi=10.0, eps=1.0, ip=1, batch_tile=None,
             io_dtype=jnp.float32):
    B = x.shape[0]
    x_flat = x.reshape(B, -1).astype(io_dtype)
    d_flat = d0.reshape(B, -1).astype(io_dtype)
    D = x_flat.shape[1]
    K = w.shape[1]

    w32 = w.astype(jnp.float32)           # [D, K]
    wt32 = w32.T                           # [K, D] -- layout plumbing in wrapper
    b2 = b.reshape(1, K).astype(jnp.float32)

    if batch_tile is None:
        batch_tile = _pick_batch_tile(B)
    assert B % batch_tile == 0, "batch must be a multiple of the batch tile"
    num_tiles = B // batch_tile
    grid = (num_tiles,)

    kernel = functools.partial(_vat_kernel, xi=float(xi), eps=float(eps),
                               ip=int(ip), inv_b=1.0 / float(B))

    n_mm = 2 * ip + 2                      # 1 x@W + (ip+1) d@W + ip backward
    itemsize = jnp.dtype(io_dtype).itemsize
    cost = pl.CostEstimate(
        flops=2 * B * D * K * n_mm + 8 * B * D * (ip + 2),
        transcendentals=B * K * (2 * ip + 2) + B * (ip + 1),
        bytes_accessed=itemsize * 2 * B * D + 4 * (2 * D * K + K) + 4 * B,
    )

    # VMEM budget: double-buffered x/d tiles + resident W/W^T/b + output tiles
    # + in-body [TB, D] f32 temporaries (~6 live) + slack; clamp to
    # [32 MiB, 64 MiB] so v5e's 16 MiB default is raised and v7x's 64 MiB
    # physical VMEM is never exceeded.
    vmem_bytes = (
        2 * 2 * batch_tile * D * itemsize
        + 2 * (2 * D * K + K) * 4
        + 2 * batch_tile * 4
        + 6 * batch_tile * D * 4
        + (2 << 20)
    )
    params = pltpu.CompilerParams(
        dimension_semantics=("parallel",),
        vmem_limit_bytes=int(min(max(vmem_bytes, 32 << 20), 64 << 20)),
    )

    per_tile = pl.pallas_call(
        kernel,
        out_shape=jax.ShapeDtypeStruct((num_tiles, 1, batch_tile), jnp.float32),
        grid=grid,
        in_specs=[
            pl.BlockSpec((batch_tile, D), lambda i: (i, 0)),   # x tile
            pl.BlockSpec((batch_tile, D), lambda i: (i, 0)),   # d tile
            pl.BlockSpec((D, K), lambda i: (0, 0)),            # W   (resident)
            pl.BlockSpec((K, D), lambda i: (0, 0)),            # W^T (resident)
            pl.BlockSpec((1, K), lambda i: (0, 0)),            # b   (resident)
        ],
        out_specs=pl.BlockSpec((1, 1, batch_tile), lambda i: (i, 0, 0)),
        compiler_params=params,
        cost_estimate=cost,
    )(x_flat, d_flat, w32, wt32, b2)

    # reduction='batchmean'
    return jnp.sum(per_tile) / B


def _reference_vat(x, d0, w, b, *, xi, eps, ip):
    """Pure-JAX reference using autodiff (validates the analytic gradient)."""
    B = x.shape[0]
    xf = x.reshape(B, -1).astype(jnp.float32)
    df = d0.reshape(B, -1).astype(jnp.float32)

    def model(inp):
        return inp @ w + b[None, :]

    def l2n(v):
        return v / (jnp.sqrt(jnp.sum(v * v, axis=1, keepdims=True)) + 1e-8)

    pred = jax.nn.softmax(model(xf), axis=1)

    def kl_loss(dd, scale):
        logp = jax.nn.log_softmax(model(xf + scale * dd), axis=1)
        return jnp.sum(pred * (jnp.log(pred) - logp)) / B

    d = l2n(df)
    for _ in range(ip):
        g = jax.grad(kl_loss)(d, xi)
        d = l2n(g)
    return kl_loss(d, eps)


def _check(tag, x, d0, w_param, b_param):
    lds = vat_loss(x, d0, w_param, b_param, xi=10.0, eps=1.0, ip=1)
    lds = jax.block_until_ready(lds)
    ref = _reference_vat(x, d0, w_param, b_param, xi=10.0, eps=1.0, ip=1)
    ref = jax.block_until_ready(ref)
    assert bool(jnp.isfinite(lds)), f"{tag}: kernel produced non-finite loss"
    assert abs(float(lds) - float(ref)) <= 1e-4 + 1e-2 * abs(float(ref)), (
        f"{tag}: mismatch kernel={float(lds)} ref={float(ref)}")


if __name__ == "__main__":
    # TODO(synk): the optional `pred` (one-hot labels) path of VATLoss.forward
    # is not implemented; only the default pred = softmax(model(x)) path is.
    key = jax.random.PRNGKey(0)
    kx, kd, kw, kx2, kd2 = jax.random.split(key, 5)

    B, C, H, Wsp = 2, 4, 16, 16     # NCHW input, matching the PyTorch usage
    K = 8                           # num_classes of the synthetic linear model
    D = C * H * Wsp

    x = jax.random.normal(kx, (B, C, H, Wsp), jnp.float32)
    # torch.rand(x.shape).sub(0.5)  ->  uniform[0,1) - 0.5
    d0 = jax.random.uniform(kd, (B, C, H, Wsp), jnp.float32) - 0.5
    # deterministic synthetic "model" parameters
    w_param = jax.random.normal(kw, (D, K), jnp.float32) * 0.05
    b_param = jnp.zeros((K,), jnp.float32)

    # Single-tile path (tiny batch, grid = 1).
    _check("B=2", x, d0, w_param, b_param)

    # Multi-tile path (grid >= 2, exercises batch tiling + lane-dense output).
    B2 = 32
    x2 = jax.random.normal(kx2, (B2, C, H, Wsp), jnp.float32)
    d2 = jax.random.uniform(kd2, (B2, C, H, Wsp), jnp.float32) - 0.5
    _check("B=32", x2, d2, w_param, b_param)

    print("KERNEL_OK")
</pallas_src>

<mosaic_0001>
module attributes {stable_mosaic.version = 11 : i64} {
  func.func @_vat_kernel(%arg0: i32, %arg1: memref<2x1024xf32, #tpu.memory_space<vmem>>, %arg2: memref<2x1024xf32, #tpu.memory_space<vmem>>, %arg3: memref<1024x8xf32, #tpu.memory_space<vmem>>, %arg4: memref<8x1024xf32, #tpu.memory_space<vmem>>, %arg5: memref<1x8xf32, #tpu.memory_space<vmem>>, %arg6: memref<1x1x2xf32, #tpu.memory_space<vmem>>) attributes {dimension_semantics = [#tpu.dimension_semantics<parallel>], iteration_bounds = array<i64: 1>, scalar_prefetch = 0 : i64, scratch_operands = 0 : i64, tpu.core_type = #tpu.core_type<tc>, window_params = [{transform_indices = @transform_0, window_bounds = array<i64: 2, 1024>}, {transform_indices = @transform_1, window_bounds = array<i64: 2, 1024>}, {pipeline_mode = #tpu.pipeline_mode<synchronous>, transform_indices = @transform_2, window_bounds = array<i64: 1024, 8>}, {pipeline_mode = #tpu.pipeline_mode<synchronous>, transform_indices = @transform_3, window_bounds = array<i64: 8, 1024>}, {pipeline_mode = #tpu.pipeline_mode<synchronous>, transform_indices = @transform_4, window_bounds = array<i64: 1, 8>}, {transform_indices = @transform_5, window_bounds = array<i64: 1, 1, 2>}]} {
    %c0 = arith.constant 0 : index
    %c0_0 = arith.constant 0 : index
    %0 = vector.load %arg1[%c0, %c0_0] : memref<2x1024xf32, #tpu.memory_space<vmem>>, vector<2x1024xf32>
    %c0_1 = arith.constant 0 : index
    %c0_2 = arith.constant 0 : index
    %1 = vector.load %arg2[%c0_1, %c0_2] : memref<2x1024xf32, #tpu.memory_space<vmem>>, vector<2x1024xf32>
    %c0_3 = arith.constant 0 : index
    %c0_4 = arith.constant 0 : index
    %2 = vector.load %arg3[%c0_3, %c0_4] : memref<1024x8xf32, #tpu.memory_space<vmem>>, vector<1024x8xf32>
    %c0_5 = arith.constant 0 : index
    %c0_6 = arith.constant 0 : index
    %3 = vector.load %arg4[%c0_5, %c0_6] : memref<8x1024xf32, #tpu.memory_space<vmem>>, vector<8x1024xf32>
    %c0_7 = arith.constant 0 : index
    %c0_8 = arith.constant 0 : index
    %4 = vector.load %arg5[%c0_7, %c0_8] : memref<1x8xf32, #tpu.memory_space<vmem>>, vector<1x8xf32>
    %cst = arith.constant dense<0.000000e+00> : vector<2x8xf32>
    %5 = tpu.matmul %0, %2, %cst {dimension_numbers = #tpu.dot_dimension_numbers<[1], [0], [0], [1], [0, 0, 1, 1], [], []>} : vector<2x1024xf32>, vector<1024x8xf32>, vector<2x8xf32> -> vector<2x8xf32>
    %6 = vector.broadcast %4 : vector<1x8xf32> to vector<2x8xf32>
    %7 = arith.addf %5, %6 : vector<2x8xf32>
    %8 = tpu.transpose %7, [1, 0] : vector<2x8xf32> -> vector<8x2xf32>
    %cst_9 = arith.constant dense<0xFF800000> : vector<2xf32>
    %9 = vector.multi_reduction <maximumf>, %8, %cst_9 [0] : vector<8x2xf32> to vector<2xf32>
    %10 = vector.shape_cast %9 : vector<2xf32> to vector<1x2xf32>
    %11 = vector.broadcast %10 : vector<1x2xf32> to vector<8x2xf32>
    %12 = arith.subf %8, %11 : vector<8x2xf32>
    %13 = math.exp %12 : vector<8x2xf32>
    %cst_10 = arith.constant dense<0.000000e+00> : vector<2xf32>
    %14 = vector.multi_reduction <add>, %13, %cst_10 [0] : vector<8x2xf32> to vector<2xf32>
    %15 = vector.shape_cast %14 : vector<2xf32> to vector<1x2xf32>
    %16 = math.log %15 : vector<1x2xf32>
    %17 = vector.broadcast %16 : vector<1x2xf32> to vector<8x2xf32>
    %18 = arith.subf %12, %17 : vector<8x2xf32>
    %19 = math.exp %18 : vector<8x2xf32>
    %20 = arith.mulf %1, %1 : vector<2x1024xf32>
    %cst_11 = arith.constant dense<0.000000e+00> : vector<2xf32>
    %21 = vector.multi_reduction <add>, %20, %cst_11 [1] : vector<2x1024xf32> to vector<2xf32>
    %22 = vector.shape_cast %21 : vector<2xf32> to vector<2x1xf32>
    %23 = math.sqrt %22 : vector<2x1xf32>
    %cst_12 = arith.constant 9.99999993E-9 : f32
    %24 = vector.broadcast %cst_12 : f32 to vector<2x1xf32>
    %25 = arith.addf %23, %24 : vector<2x1xf32>
    %26 = tpu.reciprocal %25 {approx = true} : vector<2x1xf32> -> vector<2x1xf32>
    %27 = vector.broadcast %26 : vector<2x1xf32> to vector<2x1024xf32>
    %28 = arith.mulf %1, %27 : vector<2x1024xf32>
    %cst_13 = arith.constant dense<0.000000e+00> : vector<2x8xf32>
    %29 = tpu.matmul %28, %2, %cst_13 {dimension_numbers = #tpu.dot_dimension_numbers<[1], [0], [0], [1], [0, 0, 1, 1], [], []>} : vector<2x1024xf32>, vector<1024x8xf32>, vector<2x8xf32> -> vector<2x8xf32>
    %30 = tpu.transpose %29, [1, 0] : vector<2x8xf32> -> vector<8x2xf32>
    %cst_14 = arith.constant 1.000000e+01 : f32
    %31 = vector.broadcast %cst_14 : f32 to vector<8x2xf32>
    %32 = arith.mulf %31, %30 : vector<8x2xf32>
    %33 = arith.addf %8, %32 : vector<8x2xf32>
    %cst_15 = arith.constant dense<0xFF800000> : vector<2xf32>
    %34 = vector.multi_reduction <maximumf>, %33, %cst_15 [0] : vector<8x2xf32> to vector<2xf32>
    %35 = vector.shape_cast %34 : vector<2xf32> to vector<1x2xf32>
    %36 = vector.broadcast %35 : vector<1x2xf32> to vector<8x2xf32>
    %37 = arith.subf %33, %36 : vector<8x2xf32>
    %38 = math.exp %37 : vector<8x2xf32>
    %cst_16 = arith.constant dense<0.000000e+00> : vector<2xf32>
    %39 = vector.multi_reduction <add>, %38, %cst_16 [0] : vector<8x2xf32> to vector<2xf32>
    %40 = vector.shape_cast %39 : vector<2xf32> to vector<1x2xf32>
    %41 = tpu.reciprocal %40 {approx = true} : vector<1x2xf32> -> vector<1x2xf32>
    %42 = vector.broadcast %41 : vector<1x2xf32> to vector<8x2xf32>
    %43 = arith.mulf %38, %42 : vector<8x2xf32>
    %44 = arith.subf %43, %19 : vector<8x2xf32>
    %cst_17 = arith.constant 5.000000e+00 : f32
    %45 = vector.broadcast %cst_17 : f32 to vector<8x2xf32>
    %46 = arith.mulf %45, %44 : vector<8x2xf32>
    %47 = tpu.transpose %46, [1, 0] : vector<8x2xf32> -> vector<2x8xf32>
    %cst_18 = arith.constant dense<0.000000e+00> : vector<2x1024xf32>
    %48 = tpu.matmul %47, %3, %cst_18 {dimension_numbers = #tpu.dot_dimension_numbers<[1], [0], [0], [1], [0, 0, 1, 1], [], []>} : vector<2x8xf32>, vector<8x1024xf32>, vector<2x1024xf32> -> vector<2x1024xf32>
    %49 = arith.mulf %48, %48 : vector<2x1024xf32>
    %cst_19 = arith.constant dense<0.000000e+00> : vector<2xf32>
    %50 = vector.multi_reduction <add>, %49, %cst_19 [1] : vector<2x1024xf32> to vector<2xf32>
    %51 = vector.shape_cast %50 : vector<2xf32> to vector<2x1xf32>
    %52 = math.sqrt %51 : vector<2x1xf32>
    %cst_20 = arith.constant 9.99999993E-9 : f32
    %53 = vector.broadcast %cst_20 : f32 to vector<2x1xf32>
    %54 = arith.addf %52, %53 : vector<2x1xf32>
    %55 = tpu.reciprocal %54 {approx = true} : vector<2x1xf32> -> vector<2x1xf32>
    %56 = vector.broadcast %55 : vector<2x1xf32> to vector<2x1024xf32>
    %57 = arith.mulf %48, %56 : vector<2x1024xf32>
    %cst_21 = arith.constant dense<0.000000e+00> : vector<2x8xf32>
    %58 = tpu.matmul %57, %2, %cst_21 {dimension_numbers = #tpu.dot_dimension_numbers<[1], [0], [0], [1], [0, 0, 1, 1], [], []>} : vector<2x1024xf32>, vector<1024x8xf32>, vector<2x8xf32> -> vector<2x8xf32>
    %59 = tpu.transpose %58, [1, 0] : vector<2x8xf32> -> vector<8x2xf32>
    %cst_22 = arith.constant 1.000000e+00 : f32
    %60 = vector.broadcast %cst_22 : f32 to vector<8x2xf32>
    %61 = arith.mulf %60, %59 : vector<8x2xf32>
    %62 = arith.addf %8, %61 : vector<8x2xf32>
    %cst_23 = arith.constant dense<0xFF800000> : vector<2xf32>
    %63 = vector.multi_reduction <maximumf>, %62, %cst_23 [0] : vector<8x2xf32> to vector<2xf32>
    %64 = vector.shape_cast %63 : vector<2xf32> to vector<1x2xf32>
    %65 = vector.broadcast %64 : vector<1x2xf32> to vector<8x2xf32>
    %66 = arith.subf %62, %65 : vector<8x2xf32>
    %67 = math.exp %66 : vector<8x2xf32>
    %cst_24 = arith.constant dense<0.000000e+00> : vector<2xf32>
    %68 = vector.multi_reduction <add>, %67, %cst_24 [0] : vector<8x2xf32> to vector<2xf32>
    %69 = vector.shape_cast %68 : vector<2xf32> to vector<1x2xf32>
    %70 = math.log %69 : vector<1x2xf32>
    %71 = vector.broadcast %70 : vector<1x2xf32> to vector<8x2xf32>
    %72 = arith.subf %66, %71 : vector<8x2xf32>
    %73 = arith.subf %18, %72 : vector<8x2xf32>
    %74 = arith.mulf %19, %73 : vector<8x2xf32>
    %cst_25 = arith.constant dense<0.000000e+00> : vector<2xf32>
    %75 = vector.multi_reduction <add>, %74, %cst_25 [0] : vector<8x2xf32> to vector<2xf32>
    %76 = vector.shape_cast %75 : vector<2xf32> to vector<1x2xf32>
    %77 = vector.shape_cast %76 : vector<1x2xf32> to vector<1x1x2xf32>
    %c0_26 = arith.constant 0 : index
    %c0_27 = arith.constant 0 : index
    %c0_28 = arith.constant 0 : index
    %78 = vector.load %arg6[%c0_26, %c0_27, %c0_28] : memref<1x1x2xf32, #tpu.memory_space<vmem>>, vector<1x1x2xf32>
    tpu.vector_store %arg6[%c0_26, %c0_27, %c0_28], %77 {strides = array<i32>} : memref<1x1x2xf32, #tpu.memory_space<vmem>>, vector<1x1x2xf32>,
    return
  }
  func.func @transform_0(%arg0: i32) -> (i32, i32) {
    %c0_i32 = arith.constant 0 : i32
    %c0_i32_0 = arith.constant 0 : i32
    return %arg0, %c0_i32 : i32, i32
  }
  func.func @transform_1(%arg0: i32) -> (i32, i32) {
    %c0_i32 = arith.constant 0 : i32
    %c0_i32_0 = arith.constant 0 : i32
    return %arg0, %c0_i32 : i32, i32
  }
  func.func @transform_2(%arg0: i32) -> (i32, i32) {
    %c0_i32 = arith.constant 0 : i32
    %c0_i32_0 = arith.constant 0 : i32
    %c0_i32_1 = arith.constant 0 : i32
    return %c0_i32, %c0_i32_0 : i32, i32
  }
  func.func @transform_3(%arg0: i32) -> (i32, i32) {
    %c0_i32 = arith.constant 0 : i32
    %c0_i32_0 = arith.constant 0 : i32
    %c0_i32_1 = arith.constant 0 : i32
    return %c0_i32, %c0_i32_0 : i32, i32
  }
  func.func @transform_4(%arg0: i32) -> (i32, i32) {
    %c0_i32 = arith.constant 0 : i32
    %c0_i32_0 = arith.constant 0 : i32
    %c0_i32_1 = arith.constant 0 : i32
    return %c0_i32, %c0_i32_0 : i32, i32
  }
  func.func @transform_5(%arg0: i32) -> (i32, i32, i32) {
    %c0_i32 = arith.constant 0 : i32
    %c0_i32_0 = arith.constant 0 : i32
    %c0_i32_1 = arith.constant 0 : i32
    return %arg0, %c0_i32, %c0_i32_0 : i32, i32, i32
  }
}

</mosaic_0001>

<llo_original>
// kernel: tpu_custom_call.1
$region0: #{tpu_custom_call.1}
  #allocation0 [shape = 'u32[]', space=smem, size = 0x4, offset = 0x4, fixed_abs, tag = 'smem constant byte address 0x4 - core index']
  #allocation1 [shape = 'u32[144,128]{1,0:T(1,128)}', space=vmem, size = 0x12000, scoped, tag = 'internal scratch']
  %s0 = inlined_call_operand.vmem [shape: f32[2,1024], index: 0, kind: input, shape index: {}]
  %s1 = inlined_call_operand.vmem [shape: f32[2,1024], index: 1, kind: input, shape index: {}]
  %s2 = inlined_call_operand.vmem [shape: f32[1024,8], index: 2, kind: input, shape index: {}]
  %s3 = inlined_call_operand.vmem [shape: f32[8,1024], index: 3, kind: input, shape index: {}]
  %s4 = inlined_call_operand.vmem [shape: f32[1,8], index: 4, kind: input, shape index: {}]
  %s5 = inlined_call_operand.hbm [shape: f32[1,1,2], index: 5, kind: output, shape index: {}]
  %s6 = sld [smem:[#allocation0]]
  $region30: #{tpu_custom_call.1} parent=0
    _
  %s8 = ssub.s32 1, %s6
  %s9 = scalar_select 0, %s8, %s6
  $region1: #{tpu_custom_call.1} parent=0
    #allocation2 [shape = 'u8[512]{0}', space=vmem, size = 0x400, scoped, tag = 'output window, operand 0, single buffered']
    #allocation3 [shape = 's32[1]{0}', space=sflag, size = 0x4, scoped, tag = 'scoped memory for tpu_custom_call.1']
    %10 = vsyncpa [#allocation3], 0
    // Predicated region
    $region2: #{tpu_custom_call.1} parent=1 // pred_check
      _
    $region3: #{tpu_custom_call.1} parent=1 // pred_check_branch
      %12 = sbr.rel (0) target = $region5
    $region4: #{tpu_custom_call.1} parent=1 // pred_region
      _
    $region5: #{tpu_custom_call.1} parent=1 // pred_fallthru
      _
    // Predicated region
    $region6: #{tpu_custom_call.1} parent=1 // pred_check
      _
    $region7: #{tpu_custom_call.1} parent=1 // pred_check_branch
      %14 = sbr.rel (0) target = $region9
    $region8: #{tpu_custom_call.1} parent=1 // pred_region
      _
    $region9: #{tpu_custom_call.1} parent=1 // pred_fallthru
      _
    // Predicated region
    $region10: #{tpu_custom_call.1} parent=1 // pred_check
      _
    $region11: #{tpu_custom_call.1} parent=1 // pred_check_branch
      %16 = sbr.rel (0) target = $region13
    $region12: #{tpu_custom_call.1} parent=1 // pred_region
      _
    $region13: #{tpu_custom_call.1} parent=1 // pred_fallthru
      _
    // Predicated region
    $region14: #{tpu_custom_call.1} parent=1 // pred_check
      _
    $region15: #{tpu_custom_call.1} parent=1 // pred_check_branch
      %18 = sbr.rel (0) target = $region17
    $region16: #{tpu_custom_call.1} parent=1 // pred_region
      _
    $region17: #{tpu_custom_call.1} parent=1 // pred_fallthru
      _
    // Predicated region
    $region18: #{tpu_custom_call.1} parent=1 // pred_check
      _
    $region19: #{tpu_custom_call.1} parent=1 // pred_check_branch
      %20 = sbr.rel (0) target = $region21
    $region20: #{tpu_custom_call.1} parent=1 // pred_region
      _
    $region21: #{tpu_custom_call.1} parent=1 // pred_fallthru
      _
    %v21 = vld [vmem:[%s0] sm:$0xff]
    %v22 = vld [vmem:[%s0 + $0x8] sm:$0xff]
    %v23 = vld [vmem:[%s1] sm:$0xff]
    %v24 = vld [vmem:[%s1 + $0x8] sm:$0xff]
    %v25 = vld [vmem:[%s2] sm:$0xff]
    %v26 = vld [vmem:[%s2 + $0x8] sm:$0xff]
    %v27 = vld [vmem:[%s2 + $0x10] sm:$0xff]
    %v28 = vld [vmem:[%s2 + $0x18] sm:$0xff]
    %v29 = vld [vmem:[%s2 + $0x20] sm:$0xff]
    %v30 = vld [vmem:[%s2 + $0x28] sm:$0xff]
    %v31 = vld [vmem:[%s2 + $0x30] sm:$0xff]
    %v32 = vld [vmem:[%s2 + $0x38] sm:$0xff]
    %v33 = vld [vmem:[%s2 + $0x40] sm:$0xff]
    %v34 = vld [vmem:[%s2 + $0x48] sm:$0xff]
    %v35 = vld [vmem:[%s2 + $0x50] sm:$0xff]
    %v36 = vld [vmem:[%s2 + $0x58] sm:$0xff]
    %v37 = vld [vmem:[%s2 + $0x60] sm:$0xff]
    %v38 = vld [vmem:[%s2 + $0x68] sm:$0xff]
    %v39 = vld [vmem:[%s2 + $0x70] sm:$0xff]
    %v40 = vld [vmem:[%s2 + $0x78] sm:$0xff]
    %v41 = vld [vmem:[%s2 + $0x80] sm:$0xff]
    %v42 = vld [vmem:[%s2 + $0x88] sm:$0xff]
    %v43 = vld [vmem:[%s2 + $0x90] sm:$0xff]
    %v44 = vld [vmem:[%s2 + $0x98] sm:$0xff]
    %v45 = vld [vmem:[%s2 + $0xa0] sm:$0xff]
    %v46 = vld [vmem:[%s2 + $0xa8] sm:$0xff]
    %v47 = vld [vmem:[%s2 + $0xb0] sm:$0xff]
    %v48 = vld [vmem:[%s2 + $0xb8] sm:$0xff]
    %v49 = vld [vmem:[%s2 + $0xc0] sm:$0xff]
    %v50 = vld [vmem:[%s2 + $0xc8] sm:$0xff]
    %v51 = vld [vmem:[%s2 + $0xd0] sm:$0xff]
    %v52 = vld [vmem:[%s2 + $0xd8] sm:$0xff]
    %v53 = vld [vmem:[%s2 + $0xe0] sm:$0xff]
    %v54 = vld [vmem:[%s2 + $0xe8] sm:$0xff]
    %v55 = vld [vmem:[%s2 + $0xf0] sm:$0xff]
    %v56 = vld [vmem:[%s2 + $0xf8] sm:$0xff]
    %v57 = vld [vmem:[%s2 + $0x100] sm:$0xff]
    %v58 = vld [vmem:[%s2 + $0x108] sm:$0xff]
    %v59 = vld [vmem:[%s2 + $0x110] sm:$0xff]
    %v60 = vld [vmem:[%s2 + $0x118] sm:$0xff]
    %v61 = vld [vmem:[%s2 + $0x120] sm:$0xff]
    %v62 = vld [vmem:[%s2 + $0x128] sm:$0xff]
    %v63 = vld [vmem:[%s2 + $0x130] sm:$0xff]
    %v64 = vld [vmem:[%s2 + $0x138] sm:$0xff]
    %v65 = vld [vmem:[%s2 + $0x140] sm:$0xff]
    %v66 = vld [vmem:[%s2 + $0x148] sm:$0xff]
    %v67 = vld [vmem:[%s2 + $0x150] sm:$0xff]
    %v68 = vld [vmem:[%s2 + $0x158] sm:$0xff]
    %v69 = vld [vmem:[%s2 + $0x160] sm:$0xff]
    %v70 = vld [vmem:[%s2 + $0x168] sm:$0xff]
    %v71 = vld [vmem:[%s2 + $0x170] sm:$0xff]
    %v72 = vld [vmem:[%s2 + $0x178] sm:$0xff]
    %v73 = vld [vmem:[%s2 + $0x180] sm:$0xff]
    %v74 = vld [vmem:[%s2 + $0x188] sm:$0xff]
    %v75 = vld [vmem:[%s2 + $0x190] sm:$0xff]
    %v76 = vld [vmem:[%s2 + $0x198] sm:$0xff]
    %v77 = vld [vmem:[%s2 + $0x1a0] sm:$0xff]
    %v78 = vld [vmem:[%s2 + $0x1a8] sm:$0xff]
    %v79 = vld [vmem:[%s2 + $0x1b0] sm:$0xff]
    %v80 = vld [vmem:[%s2 + $0x1b8] sm:$0xff]
    %v81 = vld [vmem:[%s2 + $0x1c0] sm:$0xff]
    %v82 = vld [vmem:[%s2 + $0x1c8] sm:$0xff]
    %v83 = vld [vmem:[%s2 + $0x1d0] sm:$0xff]
    %v84 = vld [vmem:[%s2 + $0x1d8] sm:$0xff]
    %v85 = vld [vmem:[%s2 + $0x1e0] sm:$0xff]
    %v86 = vld [vmem:[%s2 + $0x1e8] sm:$0xff]
    %v87 = vld [vmem:[%s2 + $0x1f0] sm:$0xff]
    %v88 = vld [vmem:[%s2 + $0x1f8] sm:$0xff]
    %v89 = vld [vmem:[%s2 + $0x200] sm:$0xff]
    %v90 = vld [vmem:[%s2 + $0x208] sm:$0xff]
    %v91 = vld [vmem:[%s2 + $0x210] sm:$0xff]
    %v92 = vld [vmem:[%s2 + $0x218] sm:$0xff]
    %v93 = vld [vmem:[%s2 + $0x220] sm:$0xff]
    %v94 = vld [vmem:[%s2 + $0x228] sm:$0xff]
    %v95 = vld [vmem:[%s2 + $0x230] sm:$0xff]
    %v96 = vld [vmem:[%s2 + $0x238] sm:$0xff]
    %v97 = vld [vmem:[%s2 + $0x240] sm:$0xff]
    %v98 = vld [vmem:[%s2 + $0x248] sm:$0xff]
    %v99 = vld [vmem:[%s2 + $0x250] sm:$0xff]
    %v100 = vld [vmem:[%s2 + $0x258] sm:$0xff]
    %v101 = vld [vmem:[%s2 + $0x260] sm:$0xff]
    %v102 = vld [vmem:[%s2 + $0x268] sm:$0xff]
    %v103 = vld [vmem:[%s2 + $0x270] sm:$0xff]
    %v104 = vld [vmem:[%s2 + $0x278] sm:$0xff]
    %v105 = vld [vmem:[%s2 + $0x280] sm:$0xff]
    %v106 = vld [vmem:[%s2 + $0x288] sm:$0xff]
    %v107 = vld [vmem:[%s2 + $0x290] sm:$0xff]
    %v108 = vld [vmem:[%s2 + $0x298] sm:$0xff]
    %v109 = vld [vmem:[%s2 + $0x2a0] sm:$0xff]
    %v110 = vld [vmem:[%s2 + $0x2a8] sm:$0xff]
    %v111 = vld [vmem:[%s2 + $0x2b0] sm:$0xff]
    %v112 = vld [vmem:[%s2 + $0x2b8] sm:$0xff]
    %v113 = vld [vmem:[%s2 + $0x2c0] sm:$0xff]
    %v114 = vld [vmem:[%s2 + $0x2c8] sm:$0xff]
    %v115 = vld [vmem:[%s2 + $0x2d0] sm:$0xff]
    %v116 = vld [vmem:[%s2 + $0x2d8] sm:$0xff]
    %v117 = vld [vmem:[%s2 + $0x2e0] sm:$0xff]
    %v118 = vld [vmem:[%s2 + $0x2e8] sm:$0xff]
    %v119 = vld [vmem:[%s2 + $0x2f0] sm:$0xff]
    %v120 = vld [vmem:[%s2 + $0x2f8] sm:$0xff]
    %v121 = vld [vmem:[%s2 + $0x300] sm:$0xff]
    %v122 = vld [vmem:[%s2 + $0x308] sm:$0xff]
    %v123 = vld [vmem:[%s2 + $0x310] sm:$0xff]
    %v124 = vld [vmem:[%s2 + $0x318] sm:$0xff]
    %v125 = vld [vmem:[%s2 + $0x320] sm:$0xff]
    %v126 = vld [vmem:[%s2 + $0x328] sm:$0xff]
    %v127 = vld [vmem:[%s2 + $0x330] sm:$0xff]
    %v128 = vld [vmem:[%s2 + $0x338] sm:$0xff]
    %v129 = vld [vmem:[%s2 + $0x340] sm:$0xff]
    %v130 = vld [vmem:[%s2 + $0x348] sm:$0xff]
    %v131 = vld [vmem:[%s2 + $0x350] sm:$0xff]
    %v132 = vld [vmem:[%s2 + $0x358] sm:$0xff]
    %v133 = vld [vmem:[%s2 + $0x360] sm:$0xff]
    %v134 = vld [vmem:[%s2 + $0x368] sm:$0xff]
    %v135 = vld [vmem:[%s2 + $0x370] sm:$0xff]
    %v136 = vld [vmem:[%s2 + $0x378] sm:$0xff]
    %v137 = vld [vmem:[%s2 + $0x380] sm:$0xff]
    %v138 = vld [vmem:[%s2 + $0x388] sm:$0xff]
    %v139 = vld [vmem:[%s2 + $0x390] sm:$0xff]
    %v140 = vld [vmem:[%s2 + $0x398] sm:$0xff]
    %v141 = vld [vmem:[%s2 + $0x3a0] sm:$0xff]
    %v142 = vld [vmem:[%s2 + $0x3a8] sm:$0xff]
    %v143 = vld [vmem:[%s2 + $0x3b0] sm:$0xff]
    %v144 = vld [vmem:[%s2 + $0x3b8] sm:$0xff]
    %v145 = vld [vmem:[%s2 + $0x3c0] sm:$0xff]
    %v146 = vld [vmem:[%s2 + $0x3c8] sm:$0xff]
    %v147 = vld [vmem:[%s2 + $0x3d0] sm:$0xff]
    %v148 = vld [vmem:[%s2 + $0x3d8] sm:$0xff]
    %v149 = vld [vmem:[%s2 + $0x3e0] sm:$0xff]
    %v150 = vld [vmem:[%s2 + $0x3e8] sm:$0xff]
    %v151 = vld [vmem:[%s2 + $0x3f0] sm:$0xff]
    %v152 = vld [vmem:[%s2 + $0x3f8] sm:$0xff]
    %v153 = vld [vmem:[%s3] sm:$0xff]
    %v154 = vld [vmem:[%s3 + $0x8] sm:$0xff]
    %v155 = vld [vmem:[%s3 + $0x10] sm:$0xff]
    %v156 = vld [vmem:[%s3 + $0x18] sm:$0xff]
    %v157 = vld [vmem:[%s3 + $0x20] sm:$0xff]
    %v158 = vld [vmem:[%s3 + $0x28] sm:$0xff]
    %v159 = vld [vmem:[%s3 + $0x30] sm:$0xff]
    %v160 = vld [vmem:[%s3 + $0x38] sm:$0xff]
    %v161 = vld [vmem:[%s4] sm:$0x1]
    %v163 = vlaneseq
    %v164 = vshrl.u32 %v163, 7
    %v165 = vsub.s32 0, %v164
    %v166 = vrot.slane %v161, %v165
    %v170 = vcombine.high %v21, %v21
    %v172 = vunpack.c.l.s4 1983009808
    %v173 = vunpack.c.0.s8 %v172
    %v174 = vlaneseq
    %v175 = vshrl.u32 %v174, 7
    %v176 = vsub.s32 %v173, %v175
    %v177 = vrot.slane %v21, %v176
    %v179 = vunpack.c.l.s4 1983009808
    %v180 = vunpack.c.0.s8 %v179
    %v181 = vlaneseq
    %v182 = vshrl.u32 %v181, 7
    %v183 = vsub.s32 %v180, %v182
    %v184 = vrot.slane %v170, %v183
    %v185 = vcombine.high %v177, %v177
    %v186 = vcombine.high %v184, %v184
    %v187 = vcombine.high %v22, %v22
    %v189 = vunpack.c.l.s4 1983009808
    %v190 = vunpack.c.0.s8 %v189
    %v191 = vlaneseq
    %v192 = vshrl.u32 %v191, 7
    %v193 = vsub.s32 %v190, %v192
    %v194 = vrot.slane %v22, %v193
    %v196 = vunpack.c.l.s4 1983009808
    %v197 = vunpack.c.0.s8 %v196
    %v198 = vlaneseq
    %v199 = vshrl.u32 %v198, 7
    %v200 = vsub.s32 %v197, %v199
    %v201 = vrot.slane %v187, %v200
    %v202 = vcombine.high %v194, %v194
    %v203 = vcombine.high %v201, %v201
    %212 = vmatprep.subr.mxu0 0.0
    %213 = vmatpush1.msra.mxu0 %v25
    %214 = vmatprep.subr.mxu0 0.0
    %215 = vmatpush1.msra.mxu0 %v26
    %216 = vmatprep.subr.mxu0 0.0
    %217 = vmatpush1.msra.mxu0 %v27
    %218 = vmatprep.subr.mxu0 0.0
    %219 = vmatpush1.msra.mxu0 %v28
    %220 = vmatprep.subr.mxu0 0.0
    %221 = vmatpush1.msra.mxu0 %v29
    %222 = vmatprep.subr.mxu0 0.0
    %223 = vmatpush1.msra.mxu0 %v30
    %224 = vmatprep.subr.mxu0 0.0
    %225 = vmatpush1.msra.mxu0 %v31
    %226 = vmatprep.subr.mxu0 0.0
    %227 = vmatpush1.msra.mxu0 %v32
    %228 = vmatprep.subr.mxu0 0.0
    %229 = vmatpush1.msra.mxu0 %v33
    %230 = vmatprep.subr.mxu0 0.0
    %231 = vmatpush1.msra.mxu0 %v34
    %232 = vmatprep.subr.mxu0 0.0
    %233 = vmatpush1.msra.mxu0 %v35
    %234 = vmatprep.subr.mxu0 0.0
    %235 = vmatpush1.msra.mxu0 %v36
    %236 = vmatprep.subr.mxu0 0.0
    %237 = vmatpush1.msra.mxu0 %v37
    %238 = vmatprep.subr.mxu0 0.0
    %239 = vmatpush1.msra.mxu0 %v38
    %240 = vmatprep.subr.mxu0 0.0
    %241 = vmatpush1.msra.mxu0 %v39
    %242 = vmatprep.subr.mxu0 0.0
    %243 = vmatpush1.msra.mxu0 %v40
    %244 = vmatprep.subr.mxu0 0.0
    %245 = vmatpush1.msra.mxu0 %v41
    %246 = vmatprep.subr.mxu0 0.0
    %247 = vmatpush1.msra.mxu0 %v42
    %248 = vmatprep.subr.mxu0 0.0
    %249 = vmatpush1.msra.mxu0 %v43
    %250 = vmatprep.subr.mxu0 0.0
    %251 = vmatpush1.msra.mxu0 %v44
    %252 = vmatprep.subr.mxu0 0.0
    %253 = vmatpush1.msra.mxu0 %v45
    %254 = vmatprep.subr.mxu0 0.0
    %255 = vmatpush1.msra.mxu0 %v46
    %256 = vmatprep.subr.mxu0 0.0
    %257 = vmatpush1.msra.mxu0 %v47
    %258 = vmatprep.subr.mxu0 0.0
    %259 = vmatpush1.msra.mxu0 %v48
    %260 = vmatprep.subr.mxu0 0.0
    %261 = vmatpush1.msra.mxu0 %v49
    %262 = vmatprep.subr.mxu0 0.0
    %263 = vmatpush1.msra.mxu0 %v50
    %264 = vmatprep.subr.mxu0 0.0
    %265 = vmatpush1.msra.mxu0 %v51
    %266 = vmatprep.subr.mxu0 0.0
    %267 = vmatpush1.msra.mxu0 %v52
    %268 = vmatprep.subr.mxu0 0.0
    %269 = vmatpush1.msra.mxu0 %v53
    %270 = vmatprep.subr.mxu0 0.0
    %271 = vmatpush1.msra.mxu0 %v54
    %272 = vmatprep.subr.mxu0 0.0
    %273 = vmatpush1.msra.mxu0 %v55
    %274 = vmatprep.subr.mxu0 0.0
    %275 = vmatpush1.msra.mxu0 %v56
    %276 = vmatprep.mubr.f32.mxu0 %v185
    %277 = vmatmul.mubr.f32.gmra.mrb[0].mxu0 %v177
    %v278 = vpop.f32.mrb[0].mxu0
    %v279 = vadd.f32 %v166, %v278
    %v280 = vpop.f32.mrb[0].mxu0
    %281 = vdwg.mxu0
    %282 = vmatprep.subr.mxu0 0.0
    %283 = vmatpush1.msra.mxu0 %v57
    %284 = vmatprep.subr.mxu0 0.0
    %285 = vmatpush1.msra.mxu0 %v58
    %286 = vmatprep.subr.mxu0 0.0
    %287 = vmatpush1.msra.mxu0 %v59
    %288 = vmatprep.subr.mxu0 0.0
    %289 = vmatpush1.msra.mxu0 %v60
    %290 = vmatprep.subr.mxu0 0.0
    %291 = vmatpush1.msra.mxu0 %v61
    %292 = vmatprep.subr.mxu0 0.0
    %293 = vmatpush1.msra.mxu0 %v62
    %294 = vmatprep.subr.mxu0 0.0
    %295 = vmatpush1.msra.mxu0 %v63
    %296 = vmatprep.subr.mxu0 0.0
    %297 = vmatpush1.msra.mxu0 %v64
    %298 = vmatprep.subr.mxu0 0.0
    %299 = vmatpush1.msra.mxu0 %v65
    %300 = vmatprep.subr.mxu0 0.0
    %301 = vmatpush1.msra.mxu0 %v66
    %302 = vmatprep.subr.mxu0 0.0
    %303 = vmatpush1.msra.mxu0 %v67
    %304 = vmatprep.subr.mxu0 0.0
    %305 = vmatpush1.msra.mxu0 %v68
    %306 = vmatprep.subr.mxu0 0.0
    %307 = vmatpush1.msra.mxu0 %v69
    %308 = vmatprep.subr.mxu0 0.0
    %309 = vmatpush1.msra.mxu0 %v70
    %310 = vmatprep.subr.mxu0 0.0
    %311 = vmatpush1.msra.mxu0 %v71
    %312 = vmatprep.subr.mxu0 0.0
    %313 = vmatpush1.msra.mxu0 %v72
    %314 = vmatprep.subr.mxu0 0.0
    %315 = vmatpush1.msra.mxu0 %v73
    %316 = vmatprep.subr.mxu0 0.0
    %317 = vmatpush1.msra.mxu0 %v74
    %318 = vmatprep.subr.mxu0 0.0
    %319 = vmatpush1.msra.mxu0 %v75
    %320 = vmatprep.subr.mxu0 0.0
    %321 = vmatpush1.msra.mxu0 %v76
    %322 = vmatprep.subr.mxu0 0.0
    %323 = vmatpush1.msra.mxu0 %v77
    %324 = vmatprep.subr.mxu0 0.0
    %325 = vmatpush1.msra.mxu0 %v78
    %326 = vmatprep.subr.mxu0 0.0
    %327 = vmatpush1.msra.mxu0 %v79
    %328 = vmatprep.subr.mxu0 0.0
    %329 = vmatpush1.msra.mxu0 %v80
    %330 = vmatprep.subr.mxu0 0.0
    %331 = vmatpush1.msra.mxu0 %v81
    %332 = vmatprep.subr.mxu0 0.0
    %333 = vmatpush1.msra.mxu0 %v82
    %334 = vmatprep.subr.mxu0 0.0
    %335 = vmatpush1.msra.mxu0 %v83
    %336 = vmatprep.subr.mxu0 0.0
    %337 = vmatpush1.msra.mxu0 %v84
    %338 = vmatprep.subr.mxu0 0.0
    %339 = vmatpush1.msra.mxu0 %v85
    %340 = vmatprep.subr.mxu0 0.0
    %341 = vmatpush1.msra.mxu0 %v86
    %342 = vmatprep.subr.mxu0 0.0
    %343 = vmatpush1.msra.mxu0 %v87
    %344 = vmatprep.subr.mxu0 0.0
    %345 = vmatpush1.msra.mxu0 %v88
    %346 = vmatprep.mubr.f32.mxu0 %v186
    %347 = vmatmul.mubr.f32.gmra.mrb[0].mxu0 %v184
    %v348 = vpop.f32.mrb[0].mxu0
    %v349 = vadd.f32 %v279, %v348
    %v350 = vpop.f32.mrb[0].mxu0
    %351 = vdwg.mxu0
    %352 = vmatprep.subr.mxu0 0.0
    %353 = vmatpush1.msra.mxu0 %v89
    %354 = vmatprep.subr.mxu0 0.0
    %355 = vmatpush1.msra.mxu0 %v90
    %356 = vmatprep.subr.mxu0 0.0
    %357 = vmatpush1.msra.mxu0 %v91
    %358 = vmatprep.subr.mxu0 0.0
    %359 = vmatpush1.msra.mxu0 %v92
    %360 = vmatprep.subr.mxu0 0.0
    %361 = vmatpush1.msra.mxu0 %v93
    %362 = vmatprep.subr.mxu0 0.0
    %363 = vmatpush1.msra.mxu0 %v94
    %364 = vmatprep.subr.mxu0 0.0
    %365 = vmatpush1.msra.mxu0 %v95
    %366 = vmatprep.subr.mxu0 0.0
    %367 = vmatpush1.msra.mxu0 %v96
    %368 = vmatprep.subr.mxu0 0.0
    %369 = vmatpush1.msra.mxu0 %v97
    %370 = vmatprep.subr.mxu0 0.0
    %371 = vmatpush1.msra.mxu0 %v98
    %372 = vmatprep.subr.mxu0 0.0
    %373 = vmatpush1.msra.mxu0 %v99
    %374 = vmatprep.subr.mxu0 0.0
    %375 = vmatpush1.msra.mxu0 %v100
    %376 = vmatprep.subr.mxu0 0.0
    %377 = vmatpush1.msra.mxu0 %v101
    %378 = vmatprep.subr.mxu0 0.0
    %379 = vmatpush1.msra.mxu0 %v102
    %380 = vmatprep.subr.mxu0 0.0
    %381 = vmatpush1.msra.mxu0 %v103
    %382 = vmatprep.subr.mxu0 0.0
    %383 = vmatpush1.msra.mxu0 %v104
    %384 = vmatprep.subr.mxu0 0.0
    %385 = vmatpush1.msra.mxu0 %v105
    %386 = vmatprep.subr.mxu0 0.0
    %387 = vmatpush1.msra.mxu0 %v106
    %388 = vmatprep.subr.mxu0 0.0
    %389 = vmatpush1.msra.mxu0 %v107
    %390 = vmatprep.subr.mxu0 0.0
    %391 = vmatpush1.msra.mxu0 %v108
    %392 = vmatprep.subr.mxu0 0.0
    %393 = vmatpush1.msra.mxu0 %v109
    %394 = vmatprep.subr.mxu0 0.0
    %395 = vmatpush1.msra.mxu0 %v110
    %396 = vmatprep.subr.mxu0 0.0
    %397 = vmatpush1.msra.mxu0 %v111
    %398 = vmatprep.subr.mxu0 0.0
    %399 = vmatpush1.msra.mxu0 %v112
    %400 = vmatprep.subr.mxu0 0.0
    %401 = vmatpush1.msra.mxu0 %v113
    %402 = vmatprep.subr.mxu0 0.0
    %403 = vmatpush1.msra.mxu0 %v114
    %404 = vmatprep.subr.mxu0 0.0
    %405 = vmatpush1.msra.mxu0 %v115
    %406 = vmatprep.subr.mxu0 0.0
    %407 = vmatpush1.msra.mxu0 %v116
    %408 = vmatprep.subr.mxu0 0.0
    %409 = vmatpush1.msra.mxu0 %v117
    %410 = vmatprep.subr.mxu0 0.0
    %411 = vmatpush1.msra.mxu0 %v118
    %412 = vmatprep.subr.mxu0 0.0
    %413 = vmatpush1.msra.mxu0 %v119
    %414 = vmatprep.subr.mxu0 0.0
    %415 = vmatpush1.msra.mxu0 %v120
    %416 = vmatprep.mubr.f32.mxu0 %v202
    %417 = vmatmul.mubr.f32.gmra.mrb[0].mxu0 %v194
    %v418 = vpop.f32.mrb[0].mxu0
    %v419 = vadd.f32 %v349, %v418
    %v420 = vpop.f32.mrb[0].mxu0
    %421 = vdwg.mxu0
    %422 = vmatprep.subr.mxu0 0.0
    %423 = vmatpush1.msra.mxu0 %v121
    %424 = vmatprep.subr.mxu0 0.0
    %425 = vmatpush1.msra.mxu0 %v122
    %426 = vmatprep.subr.mxu0 0.0
    %427 = vmatpush1.msra.mxu0 %v123
    %428 = vmatprep.subr.mxu0 0.0
    %429 = vmatpush1.msra.mxu0 %v124
    %430 = vmatprep.subr.mxu0 0.0
    %431 = vmatpush1.msra.mxu0 %v125
    %432 = vmatprep.subr.mxu0 0.0
    %433 = vmatpush1.msra.mxu0 %v126
    %434 = vmatprep.subr.mxu0 0.0
    %435 = vmatpush1.msra.mxu0 %v127
    %436 = vmatprep.subr.mxu0 0.0
    %437 = vmatpush1.msra.mxu0 %v128
    %438 = vmatprep.subr.mxu0 0.0
    %439 = vmatpush1.msra.mxu0 %v129
    %440 = vmatprep.subr.mxu0 0.0
    %441 = vmatpush1.msra.mxu0 %v130
    %442 = vmatprep.subr.mxu0 0.0
    %443 = vmatpush1.msra.mxu0 %v131
    %444 = vmatprep.subr.mxu0 0.0
    %445 = vmatpush1.msra.mxu0 %v132
    %446 = vmatprep.subr.mxu0 0.0
    %447 = vmatpush1.msra.mxu0 %v133
    %448 = vmatprep.subr.mxu0 0.0
    %449 = vmatpush1.msra.mxu0 %v134
    %450 = vmatprep.subr.mxu0 0.0
    %451 = vmatpush1.msra.mxu0 %v135
    %452 = vmatprep.subr.mxu0 0.0
    %453 = vmatpush1.msra.mxu0 %v136
    %454 = vmatprep.subr.mxu0 0.0
    %455 = vmatpush1.msra.mxu0 %v137
    %456 = vmatprep.subr.mxu0 0.0
    %457 = vmatpush1.msra.mxu0 %v138
    %458 = vmatprep.subr.mxu0 0.0
    %459 = vmatpush1.msra.mxu0 %v139
    %460 = vmatprep.subr.mxu0 0.0
    %461 = vmatpush1.msra.mxu0 %v140
    %462 = vmatprep.subr.mxu0 0.0
    %463 = vmatpush1.msra.mxu0 %v141
    %464 = vmatprep.subr.mxu0 0.0
    %465 = vmatpush1.msra.mxu0 %v142
    %466 = vmatprep.subr.mxu0 0.0
    %467 = vmatpush1.msra.mxu0 %v143
    %468 = vmatprep.subr.mxu0 0.0
    %469 = vmatpush1.msra.mxu0 %v144
    %470 = vmatprep.subr.mxu0 0.0
    %471 = vmatpush1.msra.mxu0 %v145
    %472 = vmatprep.subr.mxu0 0.0
    %473 = vmatpush1.msra.mxu0 %v146
    %474 = vmatprep.subr.mxu0 0.0
    %475 = vmatpush1.msra.mxu0 %v147
    %476 = vmatprep.subr.mxu0 0.0
    %477 = vmatpush1.msra.mxu0 %v148
    %478 = vmatprep.subr.mxu0 0.0
    %479 = vmatpush1.msra.mxu0 %v149
    %480 = vmatprep.subr.mxu0 0.0
    %481 = vmatpush1.msra.mxu0 %v150
    %482 = vmatprep.subr.mxu0 0.0
    %483 = vmatpush1.msra.mxu0 %v151
    %484 = vmatprep.subr.mxu0 0.0
    %485 = vmatpush1.msra.mxu0 %v152
    %486 = vmatprep.mubr.f32.mxu0 %v203
    %487 = vmatmul.mubr.f32.gmra.mrb[0].mxu0 %v201
    %v488 = vpop.f32.mrb[0].mxu0
    %v489 = vadd.f32 %v419, %v488
    %v490 = vpop.f32.mrb[0].mxu0
    %491 = vdwg.mxu0
    %492 = vxpose.xlu0.b32.start [1/16] %v489, 128
    %493 = vxpose.xlu0.b32.cont [2/16] 0.0, 128
    %494 = vxpose.xlu0.b32.cont [3/16] 0.0, 128
    %495 = vxpose.xlu0.b32.cont [4/16] 0.0, 128
    %496 = vxpose.xlu0.b32.cont [5/16] 0.0, 128
    %497 = vxpose.xlu0.b32.cont [6/16] 0.0, 128
    %498 = vxpose.xlu0.b32.cont [7/16] 0.0, 128
    %499 = vxpose.xlu0.b32.cont [8/16] 0.0, 128
    %500 = vxpose.xlu0.b32.cont [9/16] 0.0, 128
    %501 = vxpose.xlu0.b32.cont [10/16] 0.0, 128
    %502 = vxpose.xlu0.b32.cont [11/16] 0.0, 128
    %503 = vxpose.xlu0.b32.cont [12/16] 0.0, 128
    %504 = vxpose.xlu0.b32.cont [13/16] 0.0, 128
    %505 = vxpose.xlu0.b32.cont [14/16] 0.0, 128
    %506 = vxpose.xlu0.b32.cont [15/16] 0.0, 128
    %507 = vxpose.xlu0.b32.end [16/16] 0.0, 128
    %v508 = vpop.trf.xlu0
    %v509 = vpop.trf.xlu0
    %v510 = vpop.trf.xlu0
    %v511 = vpop.trf.xlu0
    %v512 = vpop.trf.xlu0
    %v513 = vpop.trf.xlu0
    %v514 = vpop.trf.xlu0
    %v515 = vpop.trf.xlu0
    %v516 = vpop.trf.xlu0
    %v517 = vpop.trf.xlu0
    %v518 = vpop.trf.xlu0
    %v519 = vpop.trf.xlu0
    %v520 = vpop.trf.xlu0
    %v521 = vpop.trf.xlu0
    %v522 = vpop.trf.xlu0
    %v523 = vpop.trf.xlu0
    %vm524 = vcmask 15360
    %v525 = vsel %vm524, %v508, -inf
    %v526 = vrot.slane %v525, 4
    %v527 = vmax.f32 %v525, %v526
    %v528 = vrot.slane %v527, 2
    %v529 = vmax.f32 %v527, %v528
    %v530 = vrot.slane %v529, 1
    %v531 = vmax.f32 %v529, %v530
    %v532 = vsub.f32 %v508, %v531
    %v533 = vmul.f32 %v532, 1.442695
    %v534 = vpow.pop %v533
    %v535 = vsel %vm524, %v534, 0.0
    %v536 = vrot.slane %v535, 4
    %v537 = vadd.f32 %v535, %v536
    %v538 = vrot.slane %v537, 2
    %v539 = vadd.f32 %v537, %v538
    %v540 = vrot.slane %v539, 1
    %v541 = vadd.f32 %v539, %v540
    %v542 = vlog2.pop %v541
    %v543 = vmul.f32 %v542, 0.6931472
    %v544 = vsub.f32 %v532, %v543
    %v545 = vmul.f32 %v544, 1.442695
    %v546 = vpow.pop %v545
    %v547 = vmul.f32 %v23, %v23
    %v548 = vmul.f32 %v24, %v24
    %v551 = vcombine.high %v547, %v547
    %v553 = vunpack.c.l.s4 1983009808
    %v554 = vunpack.c.0.s8 %v553
    %v555 = vlaneseq
    %v556 = vshrl.u32 %v555, 7
    %v557 = vsub.s32 %v554, %v556
    %v558 = vrot.slane %v547, %v557
    %v560 = vunpack.c.l.s4 1983009808
    %v561 = vunpack.c.0.s8 %v560
    %v562 = vlaneseq
    %v563 = vshrl.u32 %v562, 7
    %v564 = vsub.s32 %v561, %v563
    %v565 = vrot.slane %v551, %v564
    %v566 = vcombine.high %v558, %v558
    %v567 = vcombine.high %v565, %v565
    %v568 = vcombine.high %v548, %v548
    %v570 = vunpack.c.l.s4 1983009808
    %v571 = vunpack.c.0.s8 %v570
    %v572 = vlaneseq
    %v573 = vshrl.u32 %v572, 7
    %v574 = vsub.s32 %v571, %v573
    %v575 = vrot.slane %v548, %v574
    %v577 = vunpack.c.l.s4 1983009808
    %v578 = vunpack.c.0.s8 %v577
    %v579 = vlaneseq
    %v580 = vshrl.u32 %v579, 7
    %v581 = vsub.s32 %v578, %v580
    %v582 = vrot.slane %v568, %v581
    %v583 = vcombine.high %v575, %v575
    %v584 = vcombine.high %v582, %v582
    %vm593 = vcmask 1041408
    %v594 = vsel %vm593, %v558, 0.0
    %v595 = vsel %vm593, %v566, 0.0
    %v596 = vadd.f32 %v594, %v595
    %v597 = vsel %vm593, %v565, 0.0
    %v598 = vadd.f32 %v596, %v597
    %v599 = vsel %vm593, %v567, 0.0
    %v600 = vadd.f32 %v598, %v599
    %v601 = vsel %vm593, %v575, 0.0
    %v602 = vadd.f32 %v600, %v601
    %v603 = vsel %vm593, %v583, 0.0
    %v604 = vadd.f32 %v602, %v603
    %v605 = vsel %vm593, %v582, 0.0
    %v606 = vadd.f32 %v604, %v605
    %v607 = vsel %vm593, %v584, 0.0
    %v608 = vadd.f32 %v606, %v607
    %609 = vadd.xlane.f32.xlu0 %v608
    %v610 = vpop.xlane.xlu0 %609
    %v611 = vrsqrt.pop %v610
    %v612 = vmul.f32 %v610, %v611
    %vm613 = vcmp.eq.f32.partialorder %v610, inf
    %v614 = vsel %vm613, %v610, %v612
    %vm615 = vcmp.eq.f32.partialorder %v610, 0.0
    %v616 = vand.u32 %v610, 2147483648
    %v617 = vsel %vm615, %v616, %v614
    %v618 = vadd.f32 %v617, 1e-08
    %v619 = vrcp.pop %v618
    %v622 = vunpack.c.l.s4 269488144
    %v623 = vunpack.c.0.s8 %v622
    %v624 = vlaneseq
    %v625 = vshrl.u32 %v624, 7
    %v626 = vsub.s32 %v623, %v625
    %v627 = vrot.slane %v619, %v626
    %v629 = vmul.f32 %v23, %v627
    %v630 = vmul.f32 %v24, %v627
    %v633 = vcombine.high %v629, %v629
    %v635 = vunpack.c.l.s4 1983009808
    %v636 = vunpack.c.0.s8 %v635
    %v637 = vlaneseq
    %v638 = vshrl.u32 %v637, 7
    %v639 = vsub.s32 %v636, %v638
    %v640 = vrot.slane %v629, %v639
    %v642 = vunpack.c.l.s4 1983009808
    %v643 = vunpack.c.0.s8 %v642
    %v644 = vlaneseq
    %v645 = vshrl.u32 %v644, 7
    %v646 = vsub.s32 %v643, %v645
    %v647 = vrot.slane %v633, %v646
    %v648 = vcombine.high %v640, %v640
    %v649 = vcombine.high %v647, %v647
    %v650 = vcombine.high %v630, %v630
    %v652 = vunpack.c.l.s4 1983009808
    %v653 = vunpack.c.0.s8 %v652
    %v654 = vlaneseq
    %v655 = vshrl.u32 %v654, 7
    %v656 = vsub.s32 %v653, %v655
    %v657 = vrot.slane %v630, %v656
    %v659 = vunpack.c.l.s4 1983009808
    %v660 = vunpack.c.0.s8 %v659
    %v661 = vlaneseq
    %v662 = vshrl.u32 %v661, 7
    %v663 = vsub.s32 %v660, %v662
    %v664 = vrot.slane %v650, %v663
    %v665 = vcombine.high %v657, %v657
    %v666 = vcombine.high %v664, %v664
    %675 = vmatprep.subr.mxu0 0.0
    %676 = vmatpush1.msra.mxu0 %v25
    %677 = vmatprep.subr.mxu0 0.0
    %678 = vmatpush1.msra.mxu0 %v26
    %679 = vmatprep.subr.mxu0 0.0
    %680 = vmatpush1.msra.mxu0 %v27
    %681 = vmatprep.subr.mxu0 0.0
    %682 = vmatpush1.msra.mxu0 %v28
    %683 = vmatprep.subr.mxu0 0.0
    %684 = vmatpush1.msra.mxu0 %v29
    %685 = vmatprep.subr.mxu0 0.0
    %686 = vmatpush1.msra.mxu0 %v30
    %687 = vmatprep.subr.mxu0 0.0
    %688 = vmatpush1.msra.mxu0 %v31
    %689 = vmatprep.subr.mxu0 0.0
    %690 = vmatpush1.msra.mxu0 %v32
    %691 = vmatprep.subr.mxu0 0.0
    %692 = vmatpush1.msra.mxu0 %v33
    %693 = vmatprep.subr.mxu0 0.0
    %694 = vmatpush1.msra.mxu0 %v34
    %695 = vmatprep.subr.mxu0 0.0
    %696 = vmatpush1.msra.mxu0 %v35
    %697 = vmatprep.subr.mxu0 0.0
    %698 = vmatpush1.msra.mxu0 %v36
    %699 = vmatprep.subr.mxu0 0.0
    %700 = vmatpush1.msra.mxu0 %v37
    %701 = vmatprep.subr.mxu0 0.0
    %702 = vmatpush1.msra.mxu0 %v38
    %703 = vmatprep.subr.mxu0 0.0
    %704 = vmatpush1.msra.mxu0 %v39
    %705 = vmatprep.subr.mxu0 0.0
    %706 = vmatpush1.msra.mxu0 %v40
    %707 = vmatprep.subr.mxu0 0.0
    %708 = vmatpush1.msra.mxu0 %v41
    %709 = vmatprep.subr.mxu0 0.0
    %710 = vmatpush1.msra.mxu0 %v42
    %711 = vmatprep.subr.mxu0 0.0
    %712 = vmatpush1.msra.mxu0 %v43
    %713 = vmatprep.subr.mxu0 0.0
    %714 = vmatpush1.msra.mxu0 %v44
    %715 = vmatprep.subr.mxu0 0.0
    %716 = vmatpush1.msra.mxu0 %v45
    %717 = vmatprep.subr.mxu0 0.0
    %718 = vmatpush1.msra.mxu0 %v46
    %719 = vmatprep.subr.mxu0 0.0
    %720 = vmatpush1.msra.mxu0 %v47
    %721 = vmatprep.subr.mxu0 0.0
    %722 = vmatpush1.msra.mxu0 %v48
    %723 = vmatprep.subr.mxu0 0.0
    %724 = vmatpush1.msra.mxu0 %v49
    %725 = vmatprep.subr.mxu0 0.0
    %726 = vmatpush1.msra.mxu0 %v50
    %727 = vmatprep.subr.mxu0 0.0
    %728 = vmatpush1.msra.mxu0 %v51
    %729 = vmatprep.subr.mxu0 0.0
    %730 = vmatpush1.msra.mxu0 %v52
    %731 = vmatprep.subr.mxu0 0.0
    %732 = vmatpush1.msra.mxu0 %v53
    %733 = vmatprep.subr.mxu0 0.0
    %734 = vmatpush1.msra.mxu0 %v54
    %735 = vmatprep.subr.mxu0 0.0
    %736 = vmatpush1.msra.mxu0 %v55
    %737 = vmatprep.subr.mxu0 0.0
    %738 = vmatpush1.msra.mxu0 %v56
    %739 = vmatprep.mubr.f32.mxu0 %v648
    %740 = vmatmul.mubr.f32.gmra.mrb[0].mxu0 %v640
    %v741 = vpop.f32.mrb[0].mxu0
    %v742 = vadd.f32 0.0, %v741
    %v743 = vpop.f32.mrb[0].mxu0
    %744 = vdwg.mxu0
    %745 = vmatprep.subr.mxu0 0.0
    %746 = vmatpush1.msra.mxu0 %v57
    %747 = vmatprep.subr.mxu0 0.0
    %748 = vmatpush1.msra.mxu0 %v58
    %749 = vmatprep.subr.mxu0 0.0
    %750 = vmatpush1.msra.mxu0 %v59
    %751 = vmatprep.subr.mxu0 0.0
    %752 = vmatpush1.msra.mxu0 %v60
    %753 = vmatprep.subr.mxu0 0.0
    %754 = vmatpush1.msra.mxu0 %v61
    %755 = vmatprep.subr.mxu0 0.0
    %756 = vmatpush1.msra.mxu0 %v62
    %757 = vmatprep.subr.mxu0 0.0
    %758 = vmatpush1.msra.mxu0 %v63
    %759 = vmatprep.subr.mxu0 0.0
    %760 = vmatpush1.msra.mxu0 %v64
    %761 = vmatprep.subr.mxu0 0.0
    %762 = vmatpush1.msra.mxu0 %v65
    %763 = vmatprep.subr.mxu0 0.0
    %764 = vmatpush1.msra.mxu0 %v66
    %765 = vmatprep.subr.mxu0 0.0
    %766 = vmatpush1.msra.mxu0 %v67
    %767 = vmatprep.subr.mxu0 0.0
    %768 = vmatpush1.msra.mxu0 %v68
    %769 = vmatprep.subr.mxu0 0.0
    %770 = vmatpush1.msra.mxu0 %v69
    %771 = vmatprep.subr.mxu0 0.0
    %772 = vmatpush1.msra.mxu0 %v70
    %773 = vmatprep.subr.mxu0 0.0
    %774 = vmatpush1.msra.mxu0 %v71
    %775 = vmatprep.subr.mxu0 0.0
    %776 = vmatpush1.msra.mxu0 %v72
    %777 = vmatprep.subr.mxu0 0.0
    %778 = vmatpush1.msra.mxu0 %v73
    %779 = vmatprep.subr.mxu0 0.0
    %780 = vmatpush1.msra.mxu0 %v74
    %781 = vmatprep.subr.mxu0 0.0
    %782 = vmatpush1.msra.mxu0 %v75
    %783 = vmatprep.subr.mxu0 0.0
    %784 = vmatpush1.msra.mxu0 %v76
    %785 = vmatprep.subr.mxu0 0.0
    %786 = vmatpush1.msra.mxu0 %v77
    %787 = vmatprep.subr.mxu0 0.0
    %788 = vmatpush1.msra.mxu0 %v78
    %789 = vmatprep.subr.mxu0 0.0
    %790 = vmatpush1.msra.mxu0 %v79
    %791 = vmatprep.subr.mxu0 0.0
    %792 = vmatpush1.msra.mxu0 %v80
    %793 = vmatprep.subr.mxu0 0.0
    %794 = vmatpush1.msra.mxu0 %v81
    %795 = vmatprep.subr.mxu0 0.0
    %796 = vmatpush1.msra.mxu0 %v82
    %797 = vmatprep.subr.mxu0 0.0
    %798 = vmatpush1.msra.mxu0 %v83
    %799 = vmatprep.subr.mxu0 0.0
    %800 = vmatpush1.msra.mxu0 %v84
    %801 = vmatprep.subr.mxu0 0.0
    %802 = vmatpush1.msra.mxu0 %v85
    %803 = vmatprep.subr.mxu0 0.0
    %804 = vmatpush1.msra.mxu0 %v86
    %805 = vmatprep.subr.mxu0 0.0
    %806 = vmatpush1.msra.mxu0 %v87
    %807 = vmatprep.subr.mxu0 0.0
    %808 = vmatpush1.msra.mxu0 %v88
    %809 = vmatprep.mubr.f32.mxu0 %v649
    %810 = vmatmul.mubr.f32.gmra.mrb[0].mxu0 %v647
    %v811 = vpop.f32.mrb[0].mxu0
    %v812 = vadd.f32 %v742, %v811
    %v813 = vpop.f32.mrb[0].mxu0
    %814 = vdwg.mxu0
    %815 = vmatprep.subr.mxu0 0.0
    %816 = vmatpush1.msra.mxu0 %v89
    %817 = vmatprep.subr.mxu0 0.0
    %818 = vmatpush1.msra.mxu0 %v90
    %819 = vmatprep.subr.mxu0 0.0
    %820 = vmatpush1.msra.mxu0 %v91
    %821 = vmatprep.subr.mxu0 0.0
    %822 = vmatpush1.msra.mxu0 %v92
    %823 = vmatprep.subr.mxu0 0.0
    %824 = vmatpush1.msra.mxu0 %v93
    %825 = vmatprep.subr.mxu0 0.0
    %826 = vmatpush1.msra.mxu0 %v94
    %827 = vmatprep.subr.mxu0 0.0
    %828 = vmatpush1.msra.mxu0 %v95
    %829 = vmatprep.subr.mxu0 0.0
    %830 = vmatpush1.msra.mxu0 %v96
    %831 = vmatprep.subr.mxu0 0.0
    %832 = vmatpush1.msra.mxu0 %v97
    %833 = vmatprep.subr.mxu0 0.0
    %834 = vmatpush1.msra.mxu0 %v98
    %835 = vmatprep.subr.mxu0 0.0
    %836 = vmatpush1.msra.mxu0 %v99
    %837 = vmatprep.subr.mxu0 0.0
    %838 = vmatpush1.msra.mxu0 %v100
    %839 = vmatprep.subr.mxu0 0.0
    %840 = vmatpush1.msra.mxu0 %v101
    %841 = vmatprep.subr.mxu0 0.0
    %842 = vmatpush1.msra.mxu0 %v102
    %843 = vmatprep.subr.mxu0 0.0
    %844 = vmatpush1.msra.mxu0 %v103
    %845 = vmatprep.subr.mxu0 0.0
    %846 = vmatpush1.msra.mxu0 %v104
    %847 = vmatprep.subr.mxu0 0.0
    %848 = vmatpush1.msra.mxu0 %v105
    %849 = vmatprep.subr.mxu0 0.0
    %850 = vmatpush1.msra.mxu0 %v106
    %851 = vmatprep.subr.mxu0 0.0
    %852 = vmatpush1.msra.mxu0 %v107
    %853 = vmatprep.subr.mxu0 0.0
    %854 = vmatpush1.msra.mxu0 %v108
    %855 = vmatprep.subr.mxu0 0.0
    %856 = vmatpush1.msra.mxu0 %v109
    %857 = vmatprep.subr.mxu0 0.0
    %858 = vmatpush1.msra.mxu0 %v110
    %859 = vmatprep.subr.mxu0 0.0
    %860 = vmatpush1.msra.mxu0 %v111
    %861 = vmatprep.subr.mxu0 0.0
    %862 = vmatpush1.msra.mxu0 %v112
    %863 = vmatprep.subr.mxu0 0.0
    %864 = vmatpush1.msra.mxu0 %v113
    %865 = vmatprep.subr.mxu0 0.0
    %866 = vmatpush1.msra.mxu0 %v114
    %867 = vmatprep.subr.mxu0 0.0
    %868 = vmatpush1.msra.mxu0 %v115
    %869 = vmatprep.subr.mxu0 0.0
    %870 = vmatpush1.msra.mxu0 %v116
    %871 = vmatprep.subr.mxu0 0.0
    %872 = vmatpush1.msra.mxu0 %v117
    %873 = vmatprep.subr.mxu0 0.0
    %874 = vmatpush1.msra.mxu0 %v118
    %875 = vmatprep.subr.mxu0 0.0
    %876 = vmatpush1.msra.mxu0 %v119
    %877 = vmatprep.subr.mxu0 0.0
    %878 = vmatpush1.msra.mxu0 %v120
    %879 = vmatprep.mubr.f32.mxu0 %v665
    %880 = vmatmul.mubr.f32.gmra.mrb[0].mxu0 %v657
    %v881 = vpop.f32.mrb[0].mxu0
    %v882 = vadd.f32 %v812, %v881
    %v883 = vpop.f32.mrb[0].mxu0
    %884 = vdwg.mxu0
    %885 = vmatprep.subr.mxu0 0.0
    %886 = vmatpush1.msra.mxu0 %v121
    %887 = vmatprep.subr.mxu0 0.0
    %888 = vmatpush1.msra.mxu0 %v122
    %889 = vmatprep.subr.mxu0 0.0
    %890 = vmatpush1.msra.mxu0 %v123
    %891 = vmatprep.subr.mxu0 0.0
    %892 = vmatpush1.msra.mxu0 %v124
    %893 = vmatprep.subr.mxu0 0.0
    %894 = vmatpush1.msra.mxu0 %v125
    %895 = vmatprep.subr.mxu0 0.0
    %896 = vmatpush1.msra.mxu0 %v126
    %897 = vmatprep.subr.mxu0 0.0
    %898 = vmatpush1.msra.mxu0 %v127
    %899 = vmatprep.subr.mxu0 0.0
    %900 = vmatpush1.msra.mxu0 %v128
    %901 = vmatprep.subr.mxu0 0.0
    %902 = vmatpush1.msra.mxu0 %v129
    %903 = vmatprep.subr.mxu0 0.0
    %904 = vmatpush1.msra.mxu0 %v130
    %905 = vmatprep.subr.mxu0 0.0
    %906 = vmatpush1.msra.mxu0 %v131
    %907 = vmatprep.subr.mxu0 0.0
    %908 = vmatpush1.msra.mxu0 %v132
    %909 = vmatprep.subr.mxu0 0.0
    %910 = vmatpush1.msra.mxu0 %v133
    %911 = vmatprep.subr.mxu0 0.0
    %912 = vmatpush1.msra.mxu0 %v134
    %913 = vmatprep.subr.mxu0 0.0
    %914 = vmatpush1.msra.mxu0 %v135
    %915 = vmatprep.subr.mxu0 0.0
    %916 = vmatpush1.msra.mxu0 %v136
    %917 = vmatprep.subr.mxu0 0.0
    %918 = vmatpush1.msra.mxu0 %v137
    %919 = vmatprep.subr.mxu0 0.0
    %920 = vmatpush1.msra.mxu0 %v138
    %921 = vmatprep.subr.mxu0 0.0
    %922 = vmatpush1.msra.mxu0 %v139
    %923 = vmatprep.subr.mxu0 0.0
    %924 = vmatpush1.msra.mxu0 %v140
    %925 = vmatprep.subr.mxu0 0.0
    %926 = vmatpush1.msra.mxu0 %v141
    %927 = vmatprep.subr.mxu0 0.0
    %928 = vmatpush1.msra.mxu0 %v142
    %929 = vmatprep.subr.mxu0 0.0
    %930 = vmatpush1.msra.mxu0 %v143
    %931 = vmatprep.subr.mxu0 0.0
    %932 = vmatpush1.msra.mxu0 %v144
    %933 = vmatprep.subr.mxu0 0.0
    %934 = vmatpush1.msra.mxu0 %v145
    %935 = vmatprep.subr.mxu0 0.0
    %936 = vmatpush1.msra.mxu0 %v146
    %937 = vmatprep.subr.mxu0 0.0
    %938 = vmatpush1.msra.mxu0 %v147
    %939 = vmatprep.subr.mxu0 0.0
    %940 = vmatpush1.msra.mxu0 %v148
    %941 = vmatprep.subr.mxu0 0.0
    %942 = vmatpush1.msra.mxu0 %v149
    %943 = vmatprep.subr.mxu0 0.0
    %944 = vmatpush1.msra.mxu0 %v150
    %945 = vmatprep.subr.mxu0 0.0
    %946 = vmatpush1.msra.mxu0 %v151
    %947 = vmatprep.subr.mxu0 0.0
    %948 = vmatpush1.msra.mxu0 %v152
    %949 = vmatprep.mubr.f32.mxu0 %v666
    %950 = vmatmul.mubr.f32.gmra.mrb[0].mxu0 %v664
    %v951 = vpop.f32.mrb[0].mxu0
    %v952 = vadd.f32 %v882, %v951
    %v953 = vpop.f32.mrb[0].mxu0
    %954 = vdwg.mxu0
    %955 = vxpose.xlu0.b32.start [1/16] %v952, 128
    %956 = vxpose.xlu0.b32.cont [2/16] 0.0, 128
    %957 = vxpose.xlu0.b32.cont [3/16] 0.0, 128
    %958 = vxpose.xlu0.b32.cont [4/16] 0.0, 128
    %959 = vxpose.xlu0.b32.cont [5/16] 0.0, 128
    %960 = vxpose.xlu0.b32.cont [6/16] 0.0, 128
    %961 = vxpose.xlu0.b32.cont [7/16] 0.0, 128
    %962 = vxpose.xlu0.b32.cont [8/16] 0.0, 128
    %963 = vxpose.xlu0.b32.cont [9/16] 0.0, 128
    %964 = vxpose.xlu0.b32.cont [10/16] 0.0, 128
    %965 = vxpose.xlu0.b32.cont [11/16] 0.0, 128
    %966 = vxpose.xlu0.b32.cont [12/16] 0.0, 128
    %967 = vxpose.xlu0.b32.cont [13/16] 0.0, 128
    %968 = vxpose.xlu0.b32.cont [14/16] 0.0, 128
    %969 = vxpose.xlu0.b32.cont [15/16] 0.0, 128
    %970 = vxpose.xlu0.b32.end [16/16] 0.0, 128
    %v971 = vpop.trf.xlu0
    %v972 = vpop.trf.xlu0
    %v973 = vpop.trf.xlu0
    %v974 = vpop.trf.xlu0
    %v975 = vpop.trf.xlu0
    %v976 = vpop.trf.xlu0
    %v977 = vpop.trf.xlu0
    %v978 = vpop.trf.xlu0
    %v979 = vpop.trf.xlu0
    %v980 = vpop.trf.xlu0
    %v981 = vpop.trf.xlu0
    %v982 = vpop.trf.xlu0
    %v983 = vpop.trf.xlu0
    %v984 = vpop.trf.xlu0
    %v985 = vpop.trf.xlu0
    %v986 = vpop.trf.xlu0
    %v987 = vmul.f32 %v971, 10.0
    %v988 = vadd.f32 %v508, %v987
    %v989 = vsel %vm524, %v988, -inf
    %v990 = vrot.slane %v989, 4
    %v991 = vmax.f32 %v989, %v990
    %v992 = vrot.slane %v991, 2
    %v993 = vmax.f32 %v991, %v992
    %v994 = vrot.slane %v993, 1
    %v995 = vmax.f32 %v993, %v994
    %v996 = vsub.f32 %v988, %v995
    %v997 = vmul.f32 %v996, 1.442695
    %v998 = vpow.pop %v997
    %v999 = vsel %vm524, %v998, 0.0
    %v1000 = vrot.slane %v999, 4
    %v1001 = vadd.f32 %v999, %v1000
    %v1002 = vrot.slane %v1001, 2
    %v1003 = vadd.f32 %v1001, %v1002
    %v1004 = vrot.slane %v1003, 1
    %v1005 = vadd.f32 %v1003, %v1004
    %v1006 = vrcp.pop %v1005
    %v1007 = vmul.f32 %v998, %v1006
    %v1008 = vsub.f32 %v1007, %v546
    %v1009 = vmul.f32 %v1008, 5.0
    %1010 = vxpose.xlu0.b32.start [1/16] %v1009, 128
    %1011 = vxpose.xlu0.b32.cont [2/16] 0.0, 128
    %1012 = vxpose.xlu0.b32.cont [3/16] 0.0, 128
    %1013 = vxpose.xlu0.b32.cont [4/16] 0.0, 128
    %1014 = vxpose.xlu0.b32.cont [5/16] 0.0, 128
    %1015 = vxpose.xlu0.b32.cont [6/16] 0.0, 128
    %1016 = vxpose.xlu0.b32.cont [7/16] 0.0, 128
    %1017 = vxpose.xlu0.b32.cont [8/16] 0.0, 128
    %1018 = vxpose.xlu0.b32.cont [9/16] 0.0, 128
    %1019 = vxpose.xlu0.b32.cont [10/16] 0.0, 128
    %1020 = vxpose.xlu0.b32.cont [11/16] 0.0, 128
    %1021 = vxpose.xlu0.b32.cont [12/16] 0.0, 128
    %1022 = vxpose.xlu0.b32.cont [13/16] 0.0, 128
    %1023 = vxpose.xlu0.b32.cont [14/16] 0.0, 128
    %1024 = vxpose.xlu0.b32.cont [15/16] 0.0, 128
    %1025 = vxpose.xlu0.b32.end [16/16] 0.0, 128
    %v1026 = vpop.trf.xlu0
    %v1027 = vpop.trf.xlu0
    %v1028 = vpop.trf.xlu0
    %v1029 = vpop.trf.xlu0
    %v1030 = vpop.trf.xlu0
    %v1031 = vpop.trf.xlu0
    %v1032 = vpop.trf.xlu0
    %v1033 = vpop.trf.xlu0
    %v1034 = vpop.trf.xlu0
    %v1035 = vpop.trf.xlu0
    %v1036 = vpop.trf.xlu0
    %v1037 = vpop.trf.xlu0
    %v1038 = vpop.trf.xlu0
    %v1039 = vpop.trf.xlu0
    %v1040 = vpop.trf.xlu0
    %v1041 = vpop.trf.xlu0
    %vm1042 = vcmask 64512
    %v1044 = vsel %vm1042, %v1026, 0
    %1046 = vmatprep.subr.mxu0 %v154
    %1047 = vmatpush1.msra.mxu0 %v153
    %1048 = vmatprep.subr.mxu0 0.0
    %1049 = vmatpush1.msra.mxu0 0.0
    %1050 = vmatprep.subr.mxu0 0.0
    %1051 = vmatpush1.msra.mxu0 0.0
    %1052 = vmatprep.subr.mxu0 0.0
    %1053 = vmatpush1.msra.mxu0 0.0
    %1054 = vmatprep.subr.mxu0 0.0
    %1055 = vmatpush1.msra.mxu0 0.0
    %1056 = vmatprep.subr.mxu0 0.0
    %1057 = vmatpush1.msra.mxu0 0.0
    %1058 = vmatprep.subr.mxu0 0.0
    %1059 = vmatpush1.msra.mxu0 0.0
    %1060 = vmatprep.subr.mxu0 0.0
    %1061 = vmatpush1.msra.mxu0 0.0
    %1062 = vmatprep.subr.mxu0 0.0
    %1063 = vmatpush1.msra.mxu0 0.0
    %1064 = vmatprep.subr.mxu0 0.0
    %1065 = vmatpush1.msra.mxu0 0.0
    %1066 = vmatprep.subr.mxu0 0.0
    %1067 = vmatpush1.msra.mxu0 0.0
    %1068 = vmatprep.subr.mxu0 0.0
    %1069 = vmatpush1.msra.mxu0 0.0
    %1070 = vmatprep.subr.mxu0 0.0
    %1071 = vmatpush1.msra.mxu0 0.0
    %1072 = vmatprep.subr.mxu0 0.0
    %1073 = vmatpush1.msra.mxu0 0.0
    %1074 = vmatprep.subr.mxu0 0.0
    %1075 = vmatpush1.msra.mxu0 0.0
    %1076 = vmatprep.subr.mxu0 0.0
    %1077 = vmatpush1.msra.mxu0 0.0
    %1078 = vmatprep.subr.mxu0 0.0
    %1079 = vmatpush1.msra.mxu0 0.0
    %1080 = vmatprep.subr.mxu0 0.0
    %1081 = vmatpush1.msra.mxu0 0.0
    %1082 = vmatprep.subr.mxu0 0.0
    %1083 = vmatpush1.msra.mxu0 0.0
    %1084 = vmatprep.subr.mxu0 0.0
    %1085 = vmatpush1.msra.mxu0 0.0
    %1086 = vmatprep.subr.mxu0 0.0
    %1087 = vmatpush1.msra.mxu0 0.0
    %1088 = vmatprep.subr.mxu0 0.0
    %1089 = vmatpush1.msra.mxu0 0.0
    %1090 = vmatprep.subr.mxu0 0.0
    %1091 = vmatpush1.msra.mxu0 0.0
    %1092 = vmatprep.subr.mxu0 0.0
    %1093 = vmatpush1.msra.mxu0 0.0
    %1094 = vmatprep.subr.mxu0 0.0
    %1095 = vmatpush1.msra.mxu0 0.0
    %1096 = vmatprep.subr.mxu0 0.0
    %1097 = vmatpush1.msra.mxu0 0.0
    %1098 = vmatprep.subr.mxu0 0.0
    %1099 = vmatpush1.msra.mxu0 0.0
    %1100 = vmatprep.subr.mxu0 0.0
    %1101 = vmatpush1.msra.mxu0 0.0
    %1102 = vmatprep.subr.mxu0 0.0
    %1103 = vmatpush1.msra.mxu0 0.0
    %1104 = vmatprep.subr.mxu0 0.0
    %1105 = vmatpush1.msra.mxu0 0.0
    %1106 = vmatprep.subr.mxu0 0.0
    %1107 = vmatpush1.msra.mxu0 0.0
    %1108 = vmatprep.subr.mxu0 0.0
    %1109 = vmatpush1.msra.mxu0 0.0
    %1110 = vmatprep.mubr.f32.mxu0 0.0
    %1111 = vmatmul.mubr.f32.gmra.mrb[0].mxu0 %v1044
    %v1112 = vpop.f32.mrb[0].mxu0
    %v1113 = vadd.f32 0.0, %v1112
    %v1114 = vpop.f32.mrb[0].mxu0
    %v1115 = vadd.f32 0.0, %v1114
    %1116 = vdwg.mxu0
    %1117 = vmatprep.subr.mxu0 %v156
    %1118 = vmatpush1.msra.mxu0 %v155
    %1119 = vmatprep.subr.mxu0 0.0
    %1120 = vmatpush1.msra.mxu0 0.0
    %1121 = vmatprep.subr.mxu0 0.0
    %1122 = vmatpush1.msra.mxu0 0.0
    %1123 = vmatprep.subr.mxu0 0.0
    %1124 = vmatpush1.msra.mxu0 0.0
    %1125 = vmatprep.subr.mxu0 0.0
    %1126 = vmatpush1.msra.mxu0 0.0
    %1127 = vmatprep.subr.mxu0 0.0
    %1128 = vmatpush1.msra.mxu0 0.0
    %1129 = vmatprep.subr.mxu0 0.0
    %1130 = vmatpush1.msra.mxu0 0.0
    %1131 = vmatprep.subr.mxu0 0.0
    %1132 = vmatpush1.msra.mxu0 0.0
    %1133 = vmatprep.subr.mxu0 0.0
    %1134 = vmatpush1.msra.mxu0 0.0
    %1135 = vmatprep.subr.mxu0 0.0
    %1136 = vmatpush1.msra.mxu0 0.0
    %1137 = vmatprep.subr.mxu0 0.0
    %1138 = vmatpush1.msra.mxu0 0.0
    %1139 = vmatprep.subr.mxu0 0.0
    %1140 = vmatpush1.msra.mxu0 0.0
    %1141 = vmatprep.subr.mxu0 0.0
    %1142 = vmatpush1.msra.mxu0 0.0
    %1143 = vmatprep.subr.mxu0 0.0
    %1144 = vmatpush1.msra.mxu0 0.0
    %1145 = vmatprep.subr.mxu0 0.0
    %1146 = vmatpush1.msra.mxu0 0.0
    %1147 = vmatprep.subr.mxu0 0.0
    %1148 = vmatpush1.msra.mxu0 0.0
    %1149 = vmatprep.subr.mxu0 0.0
    %1150 = vmatpush1.msra.mxu0 0.0
    %1151 = vmatprep.subr.mxu0 0.0
    %1152 = vmatpush1.msra.mxu0 0.0
    %1153 = vmatprep.subr.mxu0 0.0
    %1154 = vmatpush1.msra.mxu0 0.0
    %1155 = vmatprep.subr.mxu0 0.0
    %1156 = vmatpush1.msra.mxu0 0.0
    %1157 = vmatprep.subr.mxu0 0.0
    %1158 = vmatpush1.msra.mxu0 0.0
    %1159 = vmatprep.subr.mxu0 0.0
    %1160 = vmatpush1.msra.mxu0 0.0
    %1161 = vmatprep.subr.mxu0 0.0
    %1162 = vmatpush1.msra.mxu0 0.0
    %1163 = vmatprep.subr.mxu0 0.0
    %1164 = vmatpush1.msra.mxu0 0.0
    %1165 = vmatprep.subr.mxu0 0.0
    %1166 = vmatpush1.msra.mxu0 0.0
    %1167 = vmatprep.subr.mxu0 0.0
    %1168 = vmatpush1.msra.mxu0 0.0
    %1169 = vmatprep.subr.mxu0 0.0
    %1170 = vmatpush1.msra.mxu0 0.0
    %1171 = vmatprep.subr.mxu0 0.0
    %1172 = vmatpush1.msra.mxu0 0.0
    %1173 = vmatprep.subr.mxu0 0.0
    %1174 = vmatpush1.msra.mxu0 0.0
    %1175 = vmatprep.subr.mxu0 0.0
    %1176 = vmatpush1.msra.mxu0 0.0
    %1177 = vmatprep.subr.mxu0 0.0
    %1178 = vmatpush1.msra.mxu0 0.0
    %1179 = vmatprep.subr.mxu0 0.0
    %1180 = vmatpush1.msra.mxu0 0.0
    %1181 = vmatprep.mubr.f32.mxu0 0.0
    %1182 = vmatmul.mubr.f32.gmra.mrb[0].mxu0 %v1044
    %v1183 = vpop.f32.mrb[0].mxu0
    %v1184 = vadd.f32 0.0, %v1183
    %v1185 = vpop.f32.mrb[0].mxu0
    %v1186 = vadd.f32 0.0, %v1185
    %1187 = vdwg.mxu0
    %1188 = vmatprep.subr.mxu0 %v158
    %1189 = vmatpush1.msra.mxu0 %v157
    %1190 = vmatprep.subr.mxu0 0.0
    %1191 = vmatpush1.msra.mxu0 0.0
    %1192 = vmatprep.subr.mxu0 0.0
    %1193 = vmatpush1.msra.mxu0 0.0
    %1194 = vmatprep.subr.mxu0 0.0
    %1195 = vmatpush1.msra.mxu0 0.0
    %1196 = vmatprep.subr.mxu0 0.0
    %1197 = vmatpush1.msra.mxu0 0.0
    %1198 = vmatprep.subr.mxu0 0.0
    %1199 = vmatpush1.msra.mxu0 0.0
    %1200 = vmatprep.subr.mxu0 0.0
    %1201 = vmatpush1.msra.mxu0 0.0
    %1202 = vmatprep.subr.mxu0 0.0
    %1203 = vmatpush1.msra.mxu0 0.0
    %1204 = vmatprep.subr.mxu0 0.0
    %1205 = vmatpush1.msra.mxu0 0.0
    %1206 = vmatprep.subr.mxu0 0.0
    %1207 = vmatpush1.msra.mxu0 0.0
    %1208 = vmatprep.subr.mxu0 0.0
    %1209 = vmatpush1.msra.mxu0 0.0
    %1210 = vmatprep.subr.mxu0 0.0
    %1211 = vmatpush1.msra.mxu0 0.0
    %1212 = vmatprep.subr.mxu0 0.0
    %1213 = vmatpush1.msra.mxu0 0.0
    %1214 = vmatprep.subr.mxu0 0.0
    %1215 = vmatpush1.msra.mxu0 0.0
    %1216 = vmatprep.subr.mxu0 0.0
    %1217 = vmatpush1.msra.mxu0 0.0
    %1218 = vmatprep.subr.mxu0 0.0
    %1219 = vmatpush1.msra.mxu0 0.0
    %1220 = vmatprep.subr.mxu0 0.0
    %1221 = vmatpush1.msra.mxu0 0.0
    %1222 = vmatprep.subr.mxu0 0.0
    %1223 = vmatpush1.msra.mxu0 0.0
    %1224 = vmatprep.subr.mxu0 0.0
    %1225 = vmatpush1.msra.mxu0 0.0
    %1226 = vmatprep.subr.mxu0 0.0
    %1227 = vmatpush1.msra.mxu0 0.0
    %1228 = vmatprep.subr.mxu0 0.0
    %1229 = vmatpush1.msra.mxu0 0.0
    %1230 = vmatprep.subr.mxu0 0.0
    %1231 = vmatpush1.msra.mxu0 0.0
    %1232 = vmatprep.subr.mxu0 0.0
    %1233 = vmatpush1.msra.mxu0 0.0
    %1234 = vmatprep.subr.mxu0 0.0
    %1235 = vmatpush1.msra.mxu0 0.0
    %1236 = vmatprep.subr.mxu0 0.0
    %1237 = vmatpush1.msra.mxu0 0.0
    %1238 = vmatprep.subr.mxu0 0.0
    %1239 = vmatpush1.msra.mxu0 0.0
    %1240 = vmatprep.subr.mxu0 0.0
    %1241 = vmatpush1.msra.mxu0 0.0
    %1242 = vmatprep.subr.mxu0 0.0
    %1243 = vmatpush1.msra.mxu0 0.0
    %1244 = vmatprep.subr.mxu0 0.0
    %1245 = vmatpush1.msra.mxu0 0.0
    %1246 = vmatprep.subr.mxu0 0.0
    %1247 = vmatpush1.msra.mxu0 0.0
    %1248 = vmatprep.subr.mxu0 0.0
    %1249 = vmatpush1.msra.mxu0 0.0
    %1250 = vmatprep.subr.mxu0 0.0
    %1251 = vmatpush1.msra.mxu0 0.0
    %1252 = vmatprep.mubr.f32.mxu0 0.0
    %1253 = vmatmul.mubr.f32.gmra.mrb[0].mxu0 %v1044
    %v1254 = vpop.f32.mrb[0].mxu0
    %v1255 = vadd.f32 0.0, %v1254
    %v1256 = vpop.f32.mrb[0].mxu0
    %v1257 = vadd.f32 0.0, %v1256
    %1258 = vdwg.mxu0
    %1259 = vmatprep.subr.mxu0 %v160
    %1260 = vmatpush1.msra.mxu0 %v159
    %1261 = vmatprep.subr.mxu0 0.0
    %1262 = vmatpush1.msra.mxu0 0.0
    %1263 = vmatprep.subr.mxu0 0.0
    %1264 = vmatpush1.msra.mxu0 0.0
    %1265 = vmatprep.subr.mxu0 0.0
    %1266 = vmatpush1.msra.mxu0 0.0
    %1267 = vmatprep.subr.mxu0 0.0
    %1268 = vmatpush1.msra.mxu0 0.0
    %1269 = vmatprep.subr.mxu0 0.0
    %1270 = vmatpush1.msra.mxu0 0.0
    %1271 = vmatprep.subr.mxu0 0.0
    %1272 = vmatpush1.msra.mxu0 0.0
    %1273 = vmatprep.subr.mxu0 0.0
    %1274 = vmatpush1.msra.mxu0 0.0
    %1275 = vmatprep.subr.mxu0 0.0
    %1276 = vmatpush1.msra.mxu0 0.0
    %1277 = vmatprep.subr.mxu0 0.0
    %1278 = vmatpush1.msra.mxu0 0.0
    %1279 = vmatprep.subr.mxu0 0.0
    %1280 = vmatpush1.msra.mxu0 0.0
    %1281 = vmatprep.subr.mxu0 0.0
    %1282 = vmatpush1.msra.mxu0 0.0
    %1283 = vmatprep.subr.mxu0 0.0
    %1284 = vmatpush1.msra.mxu0 0.0
    %1285 = vmatprep.subr.mxu0 0.0
    %1286 = vmatpush1.msra.mxu0 0.0
    %1287 = vmatprep.subr.mxu0 0.0
    %1288 = vmatpush1.msra.mxu0 0.0
    %1289 = vmatprep.subr.mxu0 0.0
    %1290 = vmatpush1.msra.mxu0 0.0
    %1291 = vmatprep.subr.mxu0 0.0
    %1292 = vmatpush1.msra.mxu0 0.0
    %1293 = vmatprep.subr.mxu0 0.0
    %1294 = vmatpush1.msra.mxu0 0.0
    %1295 = vmatprep.subr.mxu0 0.0
    %1296 = vmatpush1.msra.mxu0 0.0
    %1297 = vmatprep.subr.mxu0 0.0
    %1298 = vmatpush1.msra.mxu0 0.0
    %1299 = vmatprep.subr.mxu0 0.0
    %1300 = vmatpush1.msra.mxu0 0.0
    %1301 = vmatprep.subr.mxu0 0.0
    %1302 = vmatpush1.msra.mxu0 0.0
    %1303 = vmatprep.subr.mxu0 0.0
    %1304 = vmatpush1.msra.mxu0 0.0
    %1305 = vmatprep.subr.mxu0 0.0
    %1306 = vmatpush1.msra.mxu0 0.0
    %1307 = vmatprep.subr.mxu0 0.0
    %1308 = vmatpush1.msra.mxu0 0.0
    %1309 = vmatprep.subr.mxu0 0.0
    %1310 = vmatpush1.msra.mxu0 0.0
    %1311 = vmatprep.subr.mxu0 0.0
    %1312 = vmatpush1.msra.mxu0 0.0
    %1313 = vmatprep.subr.mxu0 0.0
    %1314 = vmatpush1.msra.mxu0 0.0
    %1315 = vmatprep.subr.mxu0 0.0
    %1316 = vmatpush1.msra.mxu0 0.0
    %1317 = vmatprep.subr.mxu0 0.0
    %1318 = vmatpush1.msra.mxu0 0.0
    %1319 = vmatprep.subr.mxu0 0.0
    %1320 = vmatpush1.msra.mxu0 0.0
    %1321 = vmatprep.subr.mxu0 0.0
    %1322 = vmatpush1.msra.mxu0 0.0
    %1323 = vmatprep.mubr.f32.mxu0 0.0
    %1324 = vmatmul.mubr.f32.gmra.mrb[0].mxu0 %v1044
    %v1325 = vpop.f32.mrb[0].mxu0
    %v1326 = vadd.f32 0.0, %v1325
    %v1327 = vpop.f32.mrb[0].mxu0
    %v1328 = vadd.f32 0.0, %v1327
    %1329 = vdwg.mxu0
    %v1330 = vmul.f32 %v1113, %v1113
    %v1331 = vmul.f32 %v1115, %v1115
    %v1332 = vmul.f32 %v1184, %v1184
    %v1333 = vmul.f32 %v1186, %v1186
    %v1334 = vmul.f32 %v1255, %v1255
    %v1335 = vmul.f32 %v1257, %v1257
    %v1336 = vmul.f32 %v1326, %v1326
    %v1337 = vmul.f32 %v1328, %v1328
    %v1338 = vsel %vm593, %v1330, 0.0
    %v1339 = vsel %vm593, %v1331, 0.0
    %v1340 = vadd.f32 %v1338, %v1339
    %v1341 = vsel %vm593, %v1332, 0.0
    %v1342 = vadd.f32 %v1340, %v1341
    %v1343 = vsel %vm593, %v1333, 0.0
    %v1344 = vadd.f32 %v1342, %v1343
    %v1345 = vsel %vm593, %v1334, 0.0
    %v1346 = vadd.f32 %v1344, %v1345
    %v1347 = vsel %vm593, %v1335, 0.0
    %v1348 = vadd.f32 %v1346, %v1347
    %v1349 = vsel %vm593, %v1336, 0.0
    %v1350 = vadd.f32 %v1348, %v1349
    %v1351 = vsel %vm593, %v1337, 0.0
    %v1352 = vadd.f32 %v1350, %v1351
    %1353 = vadd.xlane.f32.xlu0 %v1352
    %v1354 = vpop.xlane.xlu0 %1353
    %v1355 = vrsqrt.pop %v1354
    %v1356 = vmul.f32 %v1354, %v1355
    %vm1357 = vcmp.eq.f32.partialorder %v1354, inf
    %v1358 = vsel %vm1357, %v1354, %v1356
    %vm1359 = vcmp.eq.f32.partialorder %v1354, 0.0
    %v1360 = vand.u32 %v1354, 2147483648
    %v1361 = vsel %vm1359, %v1360, %v1358
    %v1362 = vadd.f32 %v1361, 1e-08
    %v1363 = vrcp.pop %v1362
    %v1364 = vmul.f32 %v1113, %v1363
    %v1365 = vmul.f32 %v1115, %v1363
    %v1366 = vmul.f32 %v1184, %v1363
    %v1367 = vmul.f32 %v1186, %v1363
    %v1368 = vmul.f32 %v1255, %v1363
    %v1369 = vmul.f32 %v1257, %v1363
    %v1370 = vmul.f32 %v1326, %v1363
    %v1371 = vmul.f32 %v1328, %v1363
    %1372 = vmatprep.subr.mxu0 0.0
    %1373 = vmatpush1.msra.mxu0 %v25
    %1374 = vmatprep.subr.mxu0 0.0
    %1375 = vmatpush1.msra.mxu0 %v26
    %1376 = vmatprep.subr.mxu0 0.0
    %1377 = vmatpush1.msra.mxu0 %v27
    %1378 = vmatprep.subr.mxu0 0.0
    %1379 = vmatpush1.msra.mxu0 %v28
    %1380 = vmatprep.subr.mxu0 0.0
    %1381 = vmatpush1.msra.mxu0 %v29
    %1382 = vmatprep.subr.mxu0 0.0
    %1383 = vmatpush1.msra.mxu0 %v30
    %1384 = vmatprep.subr.mxu0 0.0
    %1385 = vmatpush1.msra.mxu0 %v31
    %1386 = vmatprep.subr.mxu0 0.0
    %1387 = vmatpush1.msra.mxu0 %v32
    %1388 = vmatprep.subr.mxu0 0.0
    %1389 = vmatpush1.msra.mxu0 %v33
    %1390 = vmatprep.subr.mxu0 0.0
    %1391 = vmatpush1.msra.mxu0 %v34
    %1392 = vmatprep.subr.mxu0 0.0
    %1393 = vmatpush1.msra.mxu0 %v35
    %1394 = vmatprep.subr.mxu0 0.0
    %1395 = vmatpush1.msra.mxu0 %v36
    %1396 = vmatprep.subr.mxu0 0.0
    %1397 = vmatpush1.msra.mxu0 %v37
    %1398 = vmatprep.subr.mxu0 0.0
    %1399 = vmatpush1.msra.mxu0 %v38
    %1400 = vmatprep.subr.mxu0 0.0
    %1401 = vmatpush1.msra.mxu0 %v39
    %1402 = vmatprep.subr.mxu0 0.0
    %1403 = vmatpush1.msra.mxu0 %v40
    %1404 = vmatprep.subr.mxu0 0.0
    %1405 = vmatpush1.msra.mxu0 %v41
    %1406 = vmatprep.subr.mxu0 0.0
    %1407 = vmatpush1.msra.mxu0 %v42
    %1408 = vmatprep.subr.mxu0 0.0
    %1409 = vmatpush1.msra.mxu0 %v43
    %1410 = vmatprep.subr.mxu0 0.0
    %1411 = vmatpush1.msra.mxu0 %v44
    %1412 = vmatprep.subr.mxu0 0.0
    %1413 = vmatpush1.msra.mxu0 %v45
    %1414 = vmatprep.subr.mxu0 0.0
    %1415 = vmatpush1.msra.mxu0 %v46
    %1416 = vmatprep.subr.mxu0 0.0
    %1417 = vmatpush1.msra.mxu0 %v47
    %1418 = vmatprep.subr.mxu0 0.0
    %1419 = vmatpush1.msra.mxu0 %v48
    %1420 = vmatprep.subr.mxu0 0.0
    %1421 = vmatpush1.msra.mxu0 %v49
    %1422 = vmatprep.subr.mxu0 0.0
    %1423 = vmatpush1.msra.mxu0 %v50
    %1424 = vmatprep.subr.mxu0 0.0
    %1425 = vmatpush1.msra.mxu0 %v51
    %1426 = vmatprep.subr.mxu0 0.0
    %1427 = vmatpush1.msra.mxu0 %v52
    %1428 = vmatprep.subr.mxu0 0.0
    %1429 = vmatpush1.msra.mxu0 %v53
    %1430 = vmatprep.subr.mxu0 0.0
    %1431 = vmatpush1.msra.mxu0 %v54
    %1432 = vmatprep.subr.mxu0 0.0
    %1433 = vmatpush1.msra.mxu0 %v55
    %1434 = vmatprep.subr.mxu0 0.0
    %1435 = vmatpush1.msra.mxu0 %v56
    %1436 = vmatprep.mubr.f32.mxu0 %v1365
    %1437 = vmatmul.mubr.f32.gmra.mrb[0].mxu0 %v1364
    %v1438 = vpop.f32.mrb[0].mxu0
    %v1439 = vadd.f32 0.0, %v1438
    %v1440 = vpop.f32.mrb[0].mxu0
    %1441 = vdwg.mxu0
    %1442 = vmatprep.subr.mxu0 0.0
    %1443 = vmatpush1.msra.mxu0 %v57
    %1444 = vmatprep.subr.mxu0 0.0
    %1445 = vmatpush1.msra.mxu0 %v58
    %1446 = vmatprep.subr.mxu0 0.0
    %1447 = vmatpush1.msra.mxu0 %v59
    %1448 = vmatprep.subr.mxu0 0.0
    %1449 = vmatpush1.msra.mxu0 %v60
    %1450 = vmatprep.subr.mxu0 0.0
    %1451 = vmatpush1.msra.mxu0 %v61
    %1452 = vmatprep.subr.mxu0 0.0
    %1453 = vmatpush1.msra.mxu0 %v62
    %1454 = vmatprep.subr.mxu0 0.0
    %1455 = vmatpush1.msra.mxu0 %v63
    %1456 = vmatprep.subr.mxu0 0.0
    %1457 = vmatpush1.msra.mxu0 %v64
    %1458 = vmatprep.subr.mxu0 0.0
    %1459 = vmatpush1.msra.mxu0 %v65
    %1460 = vmatprep.subr.mxu0 0.0
    %1461 = vmatpush1.msra.mxu0 %v66
    %1462 = vmatprep.subr.mxu0 0.0
    %1463 = vmatpush1.msra.mxu0 %v67
    %1464 = vmatprep.subr.mxu0 0.0
    %1465 = vmatpush1.msra.mxu0 %v68
    %1466 = vmatprep.subr.mxu0 0.0
    %1467 = vmatpush1.msra.mxu0 %v69
    %1468 = vmatprep.subr.mxu0 0.0
    %1469 = vmatpush1.msra.mxu0 %v70
    %1470 = vmatprep.subr.mxu0 0.0
    %1471 = vmatpush1.msra.mxu0 %v71
    %1472 = vmatprep.subr.mxu0 0.0
    %1473 = vmatpush1.msra.mxu0 %v72
    %1474 = vmatprep.subr.mxu0 0.0
    %1475 = vmatpush1.msra.mxu0 %v73
    %1476 = vmatprep.subr.mxu0 0.0
    %1477 = vmatpush1.msra.mxu0 %v74
    %1478 = vmatprep.subr.mxu0 0.0
    %1479 = vmatpush1.msra.mxu0 %v75
    %1480 = vmatprep.subr.mxu0 0.0
    %1481 = vmatpush1.msra.mxu0 %v76
    %1482 = vmatprep.subr.mxu0 0.0
    %1483 = vmatpush1.msra.mxu0 %v77
    %1484 = vmatprep.subr.mxu0 0.0
    %1485 = vmatpush1.msra.mxu0 %v78
    %1486 = vmatprep.subr.mxu0 0.0
    %1487 = vmatpush1.msra.mxu0 %v79
    %1488 = vmatprep.subr.mxu0 0.0
    %1489 = vmatpush1.msra.mxu0 %v80
    %1490 = vmatprep.subr.mxu0 0.0
    %1491 = vmatpush1.msra.mxu0 %v81
    %1492 = vmatprep.subr.mxu0 0.0
    %1493 = vmatpush1.msra.mxu0 %v82
    %1494 = vmatprep.subr.mxu0 0.0
    %1495 = vmatpush1.msra.mxu0 %v83
    %1496 = vmatprep.subr.mxu0 0.0
    %1497 = vmatpush1.msra.mxu0 %v84
    %1498 = vmatprep.subr.mxu0 0.0
    %1499 = vmatpush1.msra.mxu0 %v85
    %1500 = vmatprep.subr.mxu0 0.0
    %1501 = vmatpush1.msra.mxu0 %v86
    %1502 = vmatprep.subr.mxu0 0.0
    %1503 = vmatpush1.msra.mxu0 %v87
    %1504 = vmatprep.subr.mxu0 0.0
    %1505 = vmatpush1.msra.mxu0 %v88
    %1506 = vmatprep.mubr.f32.mxu0 %v1367
    %1507 = vmatmul.mubr.f32.gmra.mrb[0].mxu0 %v1366
    %v1508 = vpop.f32.mrb[0].mxu0
    %v1509 = vadd.f32 %v1439, %v1508
    %v1510 = vpop.f32.mrb[0].mxu0
    %1511 = vdwg.mxu0
    %1512 = vmatprep.subr.mxu0 0.0
    %1513 = vmatpush1.msra.mxu0 %v89
    %1514 = vmatprep.subr.mxu0 0.0
    %1515 = vmatpush1.msra.mxu0 %v90
    %1516 = vmatprep.subr.mxu0 0.0
    %1517 = vmatpush1.msra.mxu0 %v91
    %1518 = vmatprep.subr.mxu0 0.0
    %1519 = vmatpush1.msra.mxu0 %v92
    %1520 = vmatprep.subr.mxu0 0.0
    %1521 = vmatpush1.msra.mxu0 %v93
    %1522 = vmatprep.subr.mxu0 0.0
    %1523 = vmatpush1.msra.mxu0 %v94
    %1524 = vmatprep.subr.mxu0 0.0
    %1525 = vmatpush1.msra.mxu0 %v95
    %1526 = vmatprep.subr.mxu0 0.0
    %1527 = vmatpush1.msra.mxu0 %v96
    %1528 = vmatprep.subr.mxu0 0.0
    %1529 = vmatpush1.msra.mxu0 %v97
    %1530 = vmatprep.subr.mxu0 0.0
    %1531 = vmatpush1.msra.mxu0 %v98
    %1532 = vmatprep.subr.mxu0 0.0
    %1533 = vmatpush1.msra.mxu0 %v99
    %1534 = vmatprep.subr.mxu0 0.0
    %1535 = vmatpush1.msra.mxu0 %v100
    %1536 = vmatprep.subr.mxu0 0.0
    %1537 = vmatpush1.msra.mxu0 %v101
    %1538 = vmatprep.subr.mxu0 0.0
    %1539 = vmatpush1.msra.mxu0 %v102
    %1540 = vmatprep.subr.mxu0 0.0
    %1541 = vmatpush1.msra.mxu0 %v103
    %1542 = vmatprep.subr.mxu0 0.0
    %1543 = vmatpush1.msra.mxu0 %v104
    %1544 = vmatprep.subr.mxu0 0.0
    %1545 = vmatpush1.msra.mxu0 %v105
    %1546 = vmatprep.subr.mxu0 0.0
    %1547 = vmatpush1.msra.mxu0 %v106
    %1548 = vmatprep.subr.mxu0 0.0
    %1549 = vmatpush1.msra.mxu0 %v107
    %1550 = vmatprep.subr.mxu0 0.0
    %1551 = vmatpush1.msra.mxu0 %v108
    %1552 = vmatprep.subr.mxu0 0.0
    %1553 = vmatpush1.msra.mxu0 %v109
    %1554 = vmatprep.subr.mxu0 0.0
    %1555 = vmatpush1.msra.mxu0 %v110
    %1556 = vmatprep.subr.mxu0 0.0
    %1557 = vmatpush1.msra.mxu0 %v111
    %1558 = vmatprep.subr.mxu0 0.0
    %1559 = vmatpush1.msra.mxu0 %v112
    %1560 = vmatprep.subr.mxu0 0.0
    %1561 = vmatpush1.msra.mxu0 %v113
    %1562 = vmatprep.subr.mxu0 0.0
    %1563 = vmatpush1.msra.mxu0 %v114
    %1564 = vmatprep.subr.mxu0 0.0
    %1565 = vmatpush1.msra.mxu0 %v115
    %1566 = vmatprep.subr.mxu0 0.0
    %1567 = vmatpush1.msra.mxu0 %v116
    %1568 = vmatprep.subr.mxu0 0.0
    %1569 = vmatpush1.msra.mxu0 %v117
    %1570 = vmatprep.subr.mxu0 0.0
    %1571 = vmatpush1.msra.mxu0 %v118
    %1572 = vmatprep.subr.mxu0 0.0
    %1573 = vmatpush1.msra.mxu0 %v119
    %1574 = vmatprep.subr.mxu0 0.0
    %1575 = vmatpush1.msra.mxu0 %v120
    %1576 = vmatprep.mubr.f32.mxu0 %v1369
    %1577 = vmatmul.mubr.f32.gmra.mrb[0].mxu0 %v1368
    %v1578 = vpop.f32.mrb[0].mxu0
    %v1579 = vadd.f32 %v1509, %v1578
    %v1580 = vpop.f32.mrb[0].mxu0
    %1581 = vdwg.mxu0
    %1582 = vmatprep.subr.mxu0 0.0
    %1583 = vmatpush1.msra.mxu0 %v121
    %1584 = vmatprep.subr.mxu0 0.0
    %1585 = vmatpush1.msra.mxu0 %v122
    %1586 = vmatprep.subr.mxu0 0.0
    %1587 = vmatpush1.msra.mxu0 %v123
    %1588 = vmatprep.subr.mxu0 0.0
    %1589 = vmatpush1.msra.mxu0 %v124
    %1590 = vmatprep.subr.mxu0 0.0
    %1591 = vmatpush1.msra.mxu0 %v125
    %1592 = vmatprep.subr.mxu0 0.0
    %1593 = vmatpush1.msra.mxu0 %v126
    %1594 = vmatprep.subr.mxu0 0.0
    %1595 = vmatpush1.msra.mxu0 %v127
    %1596 = vmatprep.subr.mxu0 0.0
    %1597 = vmatpush1.msra.mxu0 %v128
    %1598 = vmatprep.subr.mxu0 0.0
    %1599 = vmatpush1.msra.mxu0 %v129
    %1600 = vmatprep.subr.mxu0 0.0
    %1601 = vmatpush1.msra.mxu0 %v130
    %1602 = vmatprep.subr.mxu0 0.0
    %1603 = vmatpush1.msra.mxu0 %v131
    %1604 = vmatprep.subr.mxu0 0.0
    %1605 = vmatpush1.msra.mxu0 %v132
    %1606 = vmatprep.subr.mxu0 0.0
    %1607 = vmatpush1.msra.mxu0 %v133
    %1608 = vmatprep.subr.mxu0 0.0
    %1609 = vmatpush1.msra.mxu0 %v134
    %1610 = vmatprep.subr.mxu0 0.0
    %1611 = vmatpush1.msra.mxu0 %v135
    %1612 = vmatprep.subr.mxu0 0.0
    %1613 = vmatpush1.msra.mxu0 %v136
    %1614 = vmatprep.subr.mxu0 0.0
    %1615 = vmatpush1.msra.mxu0 %v137
    %1616 = vmatprep.subr.mxu0 0.0
    %1617 = vmatpush1.msra.mxu0 %v138
    %1618 = vmatprep.subr.mxu0 0.0
    %1619 = vmatpush1.msra.mxu0 %v139
    %1620 = vmatprep.subr.mxu0 0.0
    %1621 = vmatpush1.msra.mxu0 %v140
    %1622 = vmatprep.subr.mxu0 0.0
    %1623 = vmatpush1.msra.mxu0 %v141
    %1624 = vmatprep.subr.mxu0 0.0
    %1625 = vmatpush1.msra.mxu0 %v142
    %1626 = vmatprep.subr.mxu0 0.0
    %1627 = vmatpush1.msra.mxu0 %v143
    %1628 = vmatprep.subr.mxu0 0.0
    %1629 = vmatpush1.msra.mxu0 %v144
    %1630 = vmatprep.subr.mxu0 0.0
    %1631 = vmatpush1.msra.mxu0 %v145
    %1632 = vmatprep.subr.mxu0 0.0
    %1633 = vmatpush1.msra.mxu0 %v146
    %1634 = vmatprep.subr.mxu0 0.0
    %1635 = vmatpush1.msra.mxu0 %v147
    %1636 = vmatprep.subr.mxu0 0.0
    %1637 = vmatpush1.msra.mxu0 %v148
    %1638 = vmatprep.subr.mxu0 0.0
    %1639 = vmatpush1.msra.mxu0 %v149
    %1640 = vmatprep.subr.mxu0 0.0
    %1641 = vmatpush1.msra.mxu0 %v150
    %1642 = vmatprep.subr.mxu0 0.0
    %1643 = vmatpush1.msra.mxu0 %v151
    %1644 = vmatprep.subr.mxu0 0.0
    %1645 = vmatpush1.msra.mxu0 %v152
    %1646 = vmatprep.mubr.f32.mxu0 %v1371
    %1647 = vmatmul.mubr.f32.gmra.mrb[0].mxu0 %v1370
    %v1648 = vpop.f32.mrb[0].mxu0
    %v1649 = vadd.f32 %v1579, %v1648
    %v1650 = vpop.f32.mrb[0].mxu0
    %1651 = vdwg.mxu0
    %1652 = vxpose.xlu0.b32.start [1/16] %v1649, 128
    %1653 = vxpose.xlu0.b32.cont [2/16] 0.0, 128
    %1654 = vxpose.xlu0.b32.cont [3/16] 0.0, 128
    %1655 = vxpose.xlu0.b32.cont [4/16] 0.0, 128
    %1656 = vxpose.xlu0.b32.cont [5/16] 0.0, 128
    %1657 = vxpose.xlu0.b32.cont [6/16] 0.0, 128
    %1658 = vxpose.xlu0.b32.cont [7/16] 0.0, 128
    %1659 = vxpose.xlu0.b32.cont [8/16] 0.0, 128
    %1660 = vxpose.xlu0.b32.cont [9/16] 0.0, 128
    %1661 = vxpose.xlu0.b32.cont [10/16] 0.0, 128
    %1662 = vxpose.xlu0.b32.cont [11/16] 0.0, 128
    %1663 = vxpose.xlu0.b32.cont [12/16] 0.0, 128
    %1664 = vxpose.xlu0.b32.cont [13/16] 0.0, 128
    %1665 = vxpose.xlu0.b32.cont [14/16] 0.0, 128
    %1666 = vxpose.xlu0.b32.cont [15/16] 0.0, 128
    %1667 = vxpose.xlu0.b32.end [16/16] 0.0, 128
    %v1668 = vpop.trf.xlu0
    %v1669 = vpop.trf.xlu0
    %v1670 = vpop.trf.xlu0
    %v1671 = vpop.trf.xlu0
    %v1672 = vpop.trf.xlu0
    %v1673 = vpop.trf.xlu0
    %v1674 = vpop.trf.xlu0
    %v1675 = vpop.trf.xlu0
    %v1676 = vpop.trf.xlu0
    %v1677 = vpop.trf.xlu0
    %v1678 = vpop.trf.xlu0
    %v1679 = vpop.trf.xlu0
    %v1680 = vpop.trf.xlu0
    %v1681 = vpop.trf.xlu0
    %v1682 = vpop.trf.xlu0
    %v1683 = vpop.trf.xlu0
    %v1684 = vadd.f32 %v508, %v1668
    %v1685 = vsel %vm524, %v1684, -inf
    %v1686 = vrot.slane %v1685, 4
    %v1687 = vmax.f32 %v1685, %v1686
    %v1688 = vrot.slane %v1687, 2
    %v1689 = vmax.f32 %v1687, %v1688
    %v1690 = vrot.slane %v1689, 1
    %v1691 = vmax.f32 %v1689, %v1690
    %v1692 = vsub.f32 %v1684, %v1691
    %v1693 = vmul.f32 %v1692, 1.442695
    %v1694 = vpow.pop %v1693
    %v1695 = vsel %vm524, %v1694, 0.0
    %v1696 = vrot.slane %v1695, 4
    %v1697 = vadd.f32 %v1695, %v1696
    %v1698 = vrot.slane %v1697, 2
    %v1699 = vadd.f32 %v1697, %v1698
    %v1700 = vrot.slane %v1699, 1
    %v1701 = vadd.f32 %v1699, %v1700
    %v1702 = vlog2.pop %v1701
    %v1703 = vmul.f32 %v1702, 0.6931472
    %v1704 = vsub.f32 %v1692, %v1703
    %v1705 = vsub.f32 %v544, %v1704
    %v1706 = vmul.f32 %v546, %v1705
    %v1707 = vsel %vm524, %v1706, 0.0
    %v1708 = vrot.slane %v1707, 4
    %v1709 = vadd.f32 %v1707, %v1708
    %v1710 = vrot.slane %v1709, 2
    %v1711 = vadd.f32 %v1709, %v1710
    %v1712 = vrot.slane %v1711, 1
    %v1713 = vadd.f32 %v1711, %v1712
    %vm1714 = vcmask 8192
    %1715 = vst.msk [vmem:[#allocation2] sm:$0x1] %vm1714, %v1713
    // Predicated region
    $region22: #{tpu_custom_call.1} parent=1 // pred_check
      _
    $region23: #{tpu_custom_call.1} parent=1 // pred_check_branch
      %1717 = sbr.rel (0) target = $region25
    $region24: #{tpu_custom_call.1} parent=1 // pred_region
      %s1719 = ssub.s32 16, 16
      %1720 = vsyncadd [#allocation3], %s1719
      %s1722 = sshll.u32 [#allocation2], 4
      %s1723 = int_to_ptr.vmem [resolvable:$true] %s1722
      %1725 = dma.vmem_to_hbm [thread:$0]  %s1723, 16, %s5, [#allocation3]
    $region25: #{tpu_custom_call.1} parent=1 // pred_fallthru
      _
    // Predicated region
    $region26: #{tpu_custom_call.1} parent=1 // pred_check
      _
    $region27: #{tpu_custom_call.1} parent=1 // pred_check_branch
      %1727 = sbr.rel (0) target = $region29
    $region28: #{tpu_custom_call.1} parent=1 // pred_region
      %1728 = dma.done [#allocation3], 16
    $region29: #{tpu_custom_call.1} parent=1 // pred_fallthru
      _
    %1729 = vsyncpa [#allocation3], 1

</llo_original>
